<compile_context>
chip_gen: v5e
topology: v5e:2x2
jax: 0.10.0
libtpu: 0.0.40
codegen_flags: <defaults>
</compile_context>

<pallas_src>
import functools

import jax
import jax.numpy as jnp
from jax import lax
from jax.experimental import pallas as pl
from jax.experimental.pallas import tpu as pltpu


# ----------------------------- fused Pallas kernel ------------------------------

def _build_fused_kernel(n_mod, batch_blk, fusion_dim, num_heads, mod_weights):
    """Builds the fully-fused forward kernel for a fixed modality/shape config."""
    E = fusion_dim
    Dh = E // num_heads
    scale = 1.0 / (Dh ** 0.5)

    def kernel(*refs):
        bias_ref = refs[0]                                   # (MB, MB) additive mask
        feat_refs = refs[1:1 + n_mod]                        # (Bb, D_i)
        pw_refs = refs[1 + n_mod:1 + 2 * n_mod]              # (D_i, E)  pre-transposed
        pb_refs = refs[1 + 2 * n_mod:1 + 3 * n_mod]          # (1, E)
        (in_w_ref, in_b_ref, out_w_ref, out_b_ref,
         fc1_w_ref, fc1_b_ref, fc2_w_ref, fc2_b_ref,
         o_ref) = refs[1 + 3 * n_mod:]

        # ---- per-modality Linear + ReLU (+ modality scalar weight), in VMEM ----
        parts = []
        for i in range(n_mod):
            p = jnp.dot(feat_refs[i][...], pw_refs[i][...],
                        preferred_element_type=jnp.float32) + pb_refs[i][...]
            p = jnp.maximum(p, 0.0)
            # TODO(synk): nn.Dropout is identity in eval-mode forward.
            if mod_weights[i] != 1.0:
                p = p * mod_weights[i]
            parts.append(p)
        # modality-major rows == PyTorch (L, N, E).reshape(L*N, E)
        x2 = jnp.concatenate(parts, axis=0)                  # (MB, E)

        # ---- shared QKV in-projection (lane-dense 3E = 384 output) ----
        qkv = jnp.dot(x2, in_w_ref[...],
                      preferred_element_type=jnp.float32) + in_b_ref[...]   # (MB, 3E)

        bias = bias_ref[...]                                 # 0 same-batch / -1e30 cross-batch

        # ---- per-head scaled dot-product attention (static E-axis slices) ----
        ctx_heads = []
        for h in range(num_heads):
            q = qkv[:, h * Dh:(h + 1) * Dh]                  # (MB, Dh)
            k = qkv[:, E + h * Dh:E + (h + 1) * Dh]
            v = qkv[:, 2 * E + h * Dh:2 * E + (h + 1) * Dh]
            # contract over Dh without materializing k.T
            s = lax.dot_general(q, k, (((1,), (1,)), ((), ())),
                                preferred_element_type=jnp.float32) * scale + bias
            s = s - jnp.max(s, axis=-1, keepdims=True)
            p = jnp.exp(s)
            p = p * pl.reciprocal(jnp.sum(p, axis=-1, keepdims=True), approx=True)
            ctx_heads.append(jnp.dot(p, v, preferred_element_type=jnp.float32))
        ctx = jnp.concatenate(ctx_heads, axis=-1)            # (MB, E)

        attended = jnp.dot(ctx, out_w_ref[...],
                           preferred_element_type=jnp.float32) + out_b_ref[...]

        # ---- mean over the modality axis (static row-block sum) ----
        acc = attended[0:batch_blk, :]
        for i in range(1, n_mod):
            acc = acc + attended[i * batch_blk:(i + 1) * batch_blk, :]
        mean = acc * (1.0 / n_mod)                           # (Bb, E)

        # ---- fusion MLP: Linear -> ReLU -> Linear (dropout = identity) ----
        h1 = jnp.maximum(
            jnp.dot(mean, fc1_w_ref[...], preferred_element_type=jnp.float32)
            + fc1_b_ref[...], 0.0)
        o_ref[...] = (jnp.dot(h1, fc2_w_ref[...], preferred_element_type=jnp.float32)
                      + fc2_b_ref[...]).astype(o_ref.dtype)

    return kernel


# ----------------------------- model forward -------------------------------

def multimodal_fusion_forward(params, features, weights=None):
    if not features:
        raise ValueError("No features provided")
    names = [n for n, f in features.items() if f is not None]
    if not names:
        raise ValueError("No valid features after projection")

    feats = [features[n].astype(jnp.float32) for n in names]
    n_mod = len(names)
    B = feats[0].shape[0]
    E = params["fc1_w"].shape[0]
    H = params["num_heads"]
    assert E % H == 0
    mod_weights = tuple(float(weights[n]) if (weights and n in weights) else 1.0
                        for n in names)

    # Batch tiling: give v7x megacore a real parallel grid axis, but only when
    # each batch block keeps 8-sublane alignment (B=4 demo -> single block).
    blk_b = B // 2 if (B % 16 == 0) else B
    grid_b = B // blk_b
    MB = n_mod * blk_b

    # One-time host-side transposes: kernel matmuls consume (in_f, out_f) directly.
    pw = [params["proj"][n][0].T.astype(jnp.float32) for n in names]          # (D_i, E)
    pb = [params["proj"][n][1].reshape(1, E).astype(jnp.float32) for n in names]
    in_w_t = params["in_proj_w"].T.astype(jnp.float32)                         # (E, 3E)
    in_b = params["in_proj_b"].reshape(1, 3 * E).astype(jnp.float32)
    out_w_t = params["out_proj_w"].T.astype(jnp.float32)                       # (E, E)
    out_b = params["out_proj_b"].reshape(1, E).astype(jnp.float32)
    fc1_w_t = params["fc1_w"].T.astype(jnp.float32)
    fc1_b = params["fc1_b"].reshape(1, E).astype(jnp.float32)
    fc2_w_t = params["fc2_w"].T.astype(jnp.float32)
    fc2_b = params["fc2_b"].reshape(1, E).astype(jnp.float32)

    # Additive attention mask: row r = m*blk_b + b may only attend to columns of
    # the same batch element b (MultiheadAttention batches are independent).
    bidx = jnp.arange(MB) % blk_b
    bias = jnp.where(bidx[:, None] == bidx[None, :], 0.0, -1e30).astype(jnp.float32)

    kern = _build_fused_kernel(n_mod, blk_b, E, H, mod_weights)

    rep2 = lambda i: (0, 0)          # replicated (weight / mask) blocks
    row_map = lambda i: (i, 0)       # batch-tiled blocks

    in_specs = [pl.BlockSpec((MB, MB), rep2)]
    in_specs += [pl.BlockSpec((blk_b, f.shape[1]), row_map) for f in feats]
    in_specs += [pl.BlockSpec(w.shape, rep2) for w in pw]
    in_specs += [pl.BlockSpec(b.shape, rep2) for b in pb]
    in_specs += [pl.BlockSpec(a.shape, rep2) for a in
                 (in_w_t, in_b, out_w_t, out_b, fc1_w_t, fc1_b, fc2_w_t, fc2_b)]

    return pl.pallas_call(
        kern,
        out_shape=jax.ShapeDtypeStruct((B, E), jnp.float32),
        grid=(grid_b,),
        in_specs=in_specs,
        out_specs=pl.BlockSpec((blk_b, E), row_map),
        compiler_params=pltpu.CompilerParams(dimension_semantics=("parallel",)),
    )(bias, *feats, *pw, *pb,
      in_w_t, in_b, out_w_t, out_b, fc1_w_t, fc1_b, fc2_w_t, fc2_b)


# --------------------------- reference (pure JAX) ---------------------------

def reference_forward(params, features, weights=None):
    projected = []
    for name, feat in features.items():
        w, b = params["proj"][name]
        p = jnp.maximum(feat @ w.T + b, 0.0)
        if weights and name in weights:
            p = p * weights[name]
        projected.append(p)
    x = jnp.stack(projected)
    M, B, E = x.shape
    H = params["num_heads"]
    Dh = E // H
    qkv = x.reshape(M * B, E) @ params["in_proj_w"].T + params["in_proj_b"]
    q, k, v = jnp.split(qkv, 3, axis=-1)

    def th(t):
        return t.reshape(M, B, H, Dh).transpose(1, 2, 0, 3)

    qh, kh, vh = th(q), th(k), th(v)
    s = jnp.einsum("bhmd,bhnd->bhmn", qh, kh) / (Dh ** 0.5)
    p = jax.nn.softmax(s, axis=-1)
    ctx = jnp.einsum("bhmn,bhnd->bhmd", p, vh)
    ctx = ctx.transpose(2, 0, 1, 3).reshape(M * B, E)
    att = (ctx @ params["out_proj_w"].T + params["out_proj_b"]).reshape(M, B, E)
    m = att.mean(axis=0)
    h = jnp.maximum(m @ params["fc1_w"].T + params["fc1_b"], 0.0)
    return h @ params["fc2_w"].T + params["fc2_b"]


# ------------------------------ params init --------------------------------

def init_params(key, input_dims, fusion_dim, num_heads=8):
    def dense(k, out_f, in_f):
        kw, kb = jax.random.split(k)
        w = 0.02 * jax.random.normal(kw, (out_f, in_f), jnp.float32)
        b = 0.01 * jax.random.normal(kb, (out_f,), jnp.float32)
        return w, b

    keys = jax.random.split(key, len(input_dims) + 4)
    params = {"num_heads": num_heads, "proj": {}}
    for i, (name, dim) in enumerate(input_dims.items()):
        params["proj"][name] = dense(keys[i], fusion_dim, dim)
    n = len(input_dims)
    params["in_proj_w"], params["in_proj_b"] = dense(keys[n + 0], 3 * fusion_dim, fusion_dim)
    params["out_proj_w"], params["out_proj_b"] = dense(keys[n + 1], fusion_dim, fusion_dim)
    params["fc1_w"], params["fc1_b"] = dense(keys[n + 2], fusion_dim, fusion_dim)
    params["fc2_w"], params["fc2_b"] = dense(keys[n + 3], fusion_dim, fusion_dim)
    return params


# ---------------------------------- main ------------------------------------

if __name__ == "__main__":
    key = jax.random.PRNGKey(0)
    input_dims = {"image": 64, "text": 48, "audio": 32}
    fusion_dim = 128          # divisible by num_heads=8 -> head_dim=16
    batch = 4

    kp, kf = jax.random.split(key)
    params = init_params(kp, input_dims, fusion_dim, num_heads=8)
    feat_keys = jax.random.split(kf, len(input_dims))
    features = {
        name: jax.random.normal(k, (batch, dim), jnp.float32)
        for (name, dim), k in zip(input_dims.items(), feat_keys)
    }
    modality_weights = {"image": 0.5, "text": 1.0, "audio": 2.0}

    out = multimodal_fusion_forward(params, features, modality_weights)
    out = jax.block_until_ready(out)
    assert out.shape == (batch, fusion_dim)

    ref = reference_forward(params, features, modality_weights)
    max_err = float(jnp.max(jnp.abs(out - ref)))
    # tolerance leaves headroom for the approx (EUP) softmax reciprocal
    assert max_err < 5e-4, f"mismatch vs reference: {max_err}"

    print("KERNEL_OK")
</pallas_src>

<mosaic_0001>
module attributes {stable_mosaic.version = 11 : i64} {
  func.func @kernel(%arg0: i32, %arg1: memref<12x12xf32, #tpu.memory_space<vmem>>, %arg2: memref<4x64xf32, #tpu.memory_space<vmem>>, %arg3: memref<4x48xf32, #tpu.memory_space<vmem>>, %arg4: memref<4x32xf32, #tpu.memory_space<vmem>>, %arg5: memref<64x128xf32, #tpu.memory_space<vmem>>, %arg6: memref<48x128xf32, #tpu.memory_space<vmem>>, %arg7: memref<32x128xf32, #tpu.memory_space<vmem>>, %arg8: memref<1x128xf32, #tpu.memory_space<vmem>>, %arg9: memref<1x128xf32, #tpu.memory_space<vmem>>, %arg10: memref<1x128xf32, #tpu.memory_space<vmem>>, %arg11: memref<128x384xf32, #tpu.memory_space<vmem>>, %arg12: memref<1x384xf32, #tpu.memory_space<vmem>>, %arg13: memref<128x128xf32, #tpu.memory_space<vmem>>, %arg14: memref<1x128xf32, #tpu.memory_space<vmem>>, %arg15: memref<128x128xf32, #tpu.memory_space<vmem>>, %arg16: memref<1x128xf32, #tpu.memory_space<vmem>>, %arg17: memref<128x128xf32, #tpu.memory_space<vmem>>, %arg18: memref<1x128xf32, #tpu.memory_space<vmem>>, %arg19: memref<4x128xf32, #tpu.memory_space<vmem>>) attributes {dimension_semantics = [#tpu.dimension_semantics<parallel>], iteration_bounds = array<i64: 1>, scalar_prefetch = 0 : i64, scratch_operands = 0 : i64, tpu.core_type = #tpu.core_type<tc>, window_params = [{pipeline_mode = #tpu.pipeline_mode<synchronous>, transform_indices = @transform_0, window_bounds = array<i64: 12, 12>}, {transform_indices = @transform_1, window_bounds = array<i64: 4, 64>}, {transform_indices = @transform_2, window_bounds = array<i64: 4, 48>}, {transform_indices = @transform_3, window_bounds = array<i64: 4, 32>}, {pipeline_mode = #tpu.pipeline_mode<synchronous>, transform_indices = @transform_4, window_bounds = array<i64: 64, 128>}, {pipeline_mode = #tpu.pipeline_mode<synchronous>, transform_indices = @transform_5, window_bounds = array<i64: 48, 128>}, {pipeline_mode = #tpu.pipeline_mode<synchronous>, transform_indices = @transform_6, window_bounds = array<i64: 32, 128>}, {pipeline_mode = #tpu.pipeline_mode<synchronous>, transform_indices = @transform_7, window_bounds = array<i64: 1, 128>}, {pipeline_mode = #tpu.pipeline_mode<synchronous>, transform_indices = @transform_8, window_bounds = array<i64: 1, 128>}, {pipeline_mode = #tpu.pipeline_mode<synchronous>, transform_indices = @transform_9, window_bounds = array<i64: 1, 128>}, {pipeline_mode = #tpu.pipeline_mode<synchronous>, transform_indices = @transform_10, window_bounds = array<i64: 128, 384>}, {pipeline_mode = #tpu.pipeline_mode<synchronous>, transform_indices = @transform_11, window_bounds = array<i64: 1, 384>}, {pipeline_mode = #tpu.pipeline_mode<synchronous>, transform_indices = @transform_12, window_bounds = array<i64: 128, 128>}, {pipeline_mode = #tpu.pipeline_mode<synchronous>, transform_indices = @transform_13, window_bounds = array<i64: 1, 128>}, {pipeline_mode = #tpu.pipeline_mode<synchronous>, transform_indices = @transform_14, window_bounds = array<i64: 128, 128>}, {pipeline_mode = #tpu.pipeline_mode<synchronous>, transform_indices = @transform_15, window_bounds = array<i64: 1, 128>}, {pipeline_mode = #tpu.pipeline_mode<synchronous>, transform_indices = @transform_16, window_bounds = array<i64: 128, 128>}, {pipeline_mode = #tpu.pipeline_mode<synchronous>, transform_indices = @transform_17, window_bounds = array<i64: 1, 128>}, {transform_indices = @transform_18, window_bounds = array<i64: 4, 128>}]} {
    %c0 = arith.constant 0 : index
    %c0_0 = arith.constant 0 : index
    %0 = vector.load %arg2[%c0, %c0_0] : memref<4x64xf32, #tpu.memory_space<vmem>>, vector<4x64xf32>
    %c0_1 = arith.constant 0 : index
    %c0_2 = arith.constant 0 : index
    %1 = vector.load %arg5[%c0_1, %c0_2] : memref<64x128xf32, #tpu.memory_space<vmem>>, vector<64x128xf32>
    %cst = arith.constant dense<0.000000e+00> : vector<4x128xf32>
    %2 = tpu.matmul %0, %1, %cst {dimension_numbers = #tpu.dot_dimension_numbers<[1], [0], [0], [1], [0, 0, 1, 1], [], []>} : vector<4x64xf32>, vector<64x128xf32>, vector<4x128xf32> -> vector<4x128xf32>
    %c0_3 = arith.constant 0 : index
    %c0_4 = arith.constant 0 : index
    %3 = vector.load %arg8[%c0_3, %c0_4] : memref<1x128xf32, #tpu.memory_space<vmem>>, vector<1x128xf32>
    %4 = vector.broadcast %3 : vector<1x128xf32> to vector<4x128xf32>
    %5 = arith.addf %2, %4 : vector<4x128xf32>
    %cst_5 = arith.constant 0.000000e+00 : f32
    %6 = vector.broadcast %cst_5 : f32 to vector<4x128xf32>
    %7 = arith.maximumf %5, %6 : vector<4x128xf32>
    %cst_6 = arith.constant 5.000000e-01 : f32
    %8 = vector.broadcast %cst_6 : f32 to vector<4x128xf32>
    %9 = arith.mulf %7, %8 : vector<4x128xf32>
    %c0_7 = arith.constant 0 : index
    %c0_8 = arith.constant 0 : index
    %10 = vector.load %arg3[%c0_7, %c0_8] : memref<4x48xf32, #tpu.memory_space<vmem>>, vector<4x48xf32>
    %c0_9 = arith.constant 0 : index
    %c0_10 = arith.constant 0 : index
    %11 = vector.load %arg6[%c0_9, %c0_10] : memref<48x128xf32, #tpu.memory_space<vmem>>, vector<48x128xf32>
    %cst_11 = arith.constant dense<0.000000e+00> : vector<4x128xf32>
    %12 = tpu.matmul %10, %11, %cst_11 {dimension_numbers = #tpu.dot_dimension_numbers<[1], [0], [0], [1], [0, 0, 1, 1], [], []>} : vector<4x48xf32>, vector<48x128xf32>, vector<4x128xf32> -> vector<4x128xf32>
    %c0_12 = arith.constant 0 : index
    %c0_13 = arith.constant 0 : index
    %13 = vector.load %arg9[%c0_12, %c0_13] : memref<1x128xf32, #tpu.memory_space<vmem>>, vector<1x128xf32>
    %14 = vector.broadcast %13 : vector<1x128xf32> to vector<4x128xf32>
    %15 = arith.addf %12, %14 : vector<4x128xf32>
    %cst_14 = arith.constant 0.000000e+00 : f32
    %16 = vector.broadcast %cst_14 : f32 to vector<4x128xf32>
    %17 = arith.maximumf %15, %16 : vector<4x128xf32>
    %c0_15 = arith.constant 0 : index
    %c0_16 = arith.constant 0 : index
    %18 = vector.load %arg4[%c0_15, %c0_16] : memref<4x32xf32, #tpu.memory_space<vmem>>, vector<4x32xf32>
    %c0_17 = arith.constant 0 : index
    %c0_18 = arith.constant 0 : index
    %19 = vector.load %arg7[%c0_17, %c0_18] : memref<32x128xf32, #tpu.memory_space<vmem>>, vector<32x128xf32>
    %cst_19 = arith.constant dense<0.000000e+00> : vector<4x128xf32>
    %20 = tpu.matmul %18, %19, %cst_19 {dimension_numbers = #tpu.dot_dimension_numbers<[1], [0], [0], [1], [0, 0, 1, 1], [], []>} : vector<4x32xf32>, vector<32x128xf32>, vector<4x128xf32> -> vector<4x128xf32>
    %c0_20 = arith.constant 0 : index
    %c0_21 = arith.constant 0 : index
    %21 = vector.load %arg10[%c0_20, %c0_21] : memref<1x128xf32, #tpu.memory_space<vmem>>, vector<1x128xf32>
    %22 = vector.broadcast %21 : vector<1x128xf32> to vector<4x128xf32>
    %23 = arith.addf %20, %22 : vector<4x128xf32>
    %cst_22 = arith.constant 0.000000e+00 : f32
    %24 = vector.broadcast %cst_22 : f32 to vector<4x128xf32>
    %25 = arith.maximumf %23, %24 : vector<4x128xf32>
    %cst_23 = arith.constant 2.000000e+00 : f32
    %26 = vector.broadcast %cst_23 : f32 to vector<4x128xf32>
    %27 = arith.mulf %25, %26 : vector<4x128xf32>
    %28 = tpu.concatenate %9, %17, %27 in 0 : vector<4x128xf32>, vector<4x128xf32>, vector<4x128xf32> -> vector<12x128xf32>
    %c0_24 = arith.constant 0 : index
    %c0_25 = arith.constant 0 : index
    %29 = vector.load %arg11[%c0_24, %c0_25] : memref<128x384xf32, #tpu.memory_space<vmem>>, vector<128x384xf32>
    %cst_26 = arith.constant dense<0.000000e+00> : vector<12x384xf32>
    %30 = tpu.matmul %28, %29, %cst_26 {dimension_numbers = #tpu.dot_dimension_numbers<[1], [0], [0], [1], [0, 0, 1, 1], [], []>} : vector<12x128xf32>, vector<128x384xf32>, vector<12x384xf32> -> vector<12x384xf32>
    %c0_27 = arith.constant 0 : index
    %c0_28 = arith.constant 0 : index
    %31 = vector.load %arg12[%c0_27, %c0_28] : memref<1x384xf32, #tpu.memory_space<vmem>>, vector<1x384xf32>
    %32 = vector.broadcast %31 : vector<1x384xf32> to vector<12x384xf32>
    %33 = arith.addf %30, %32 : vector<12x384xf32>
    %c0_29 = arith.constant 0 : index
    %c0_30 = arith.constant 0 : index
    %34 = vector.load %arg1[%c0_29, %c0_30] : memref<12x12xf32, #tpu.memory_space<vmem>>, vector<12x12xf32>
    %35 = vector.extract_strided_slice %33 {offsets = [0, 0], sizes = [12, 16], strides = [1, 1]} : vector<12x384xf32> to vector<12x16xf32>
    %36 = vector.extract_strided_slice %33 {offsets = [0, 128], sizes = [12, 16], strides = [1, 1]} : vector<12x384xf32> to vector<12x16xf32>
    %37 = vector.extract_strided_slice %33 {offsets = [0, 256], sizes = [12, 16], strides = [1, 1]} : vector<12x384xf32> to vector<12x16xf32>
    %cst_31 = arith.constant dense<0.000000e+00> : vector<12x12xf32>
    %38 = tpu.matmul %35, %36, %cst_31 {dimension_numbers = #tpu.dot_dimension_numbers<[1], [1], [0], [0], [0, 0, 1, 0], [], []>} : vector<12x16xf32>, vector<12x16xf32>, vector<12x12xf32> -> vector<12x12xf32>
    %cst_32 = arith.constant 2.500000e-01 : f32
    %39 = vector.broadcast %cst_32 : f32 to vector<12x12xf32>
    %40 = arith.mulf %38, %39 : vector<12x12xf32>
    %41 = arith.addf %40, %34 : vector<12x12xf32>
    %cst_33 = arith.constant dense<0xFF800000> : vector<12xf32>
    %42 = vector.multi_reduction <maximumf>, %41, %cst_33 [1] : vector<12x12xf32> to vector<12xf32>
    %43 = vector.shape_cast %42 : vector<12xf32> to vector<12x1xf32>
    %44 = vector.broadcast %43 : vector<12x1xf32> to vector<12x12xf32>
    %45 = arith.subf %41, %44 : vector<12x12xf32>
    %46 = math.exp %45 : vector<12x12xf32>
    %cst_34 = arith.constant dense<0.000000e+00> : vector<12xf32>
    %47 = vector.multi_reduction <add>, %46, %cst_34 [1] : vector<12x12xf32> to vector<12xf32>
    %48 = vector.shape_cast %47 : vector<12xf32> to vector<12x1xf32>
    %49 = tpu.reciprocal %48 {approx = true} : vector<12x1xf32> -> vector<12x1xf32>
    %50 = vector.broadcast %49 : vector<12x1xf32> to vector<12x12xf32>
    %51 = arith.mulf %46, %50 : vector<12x12xf32>
    %cst_35 = arith.constant dense<0.000000e+00> : vector<12x16xf32>
    %52 = tpu.matmul %51, %37, %cst_35 {dimension_numbers = #tpu.dot_dimension_numbers<[1], [0], [0], [1], [0, 0, 1, 1], [], []>} : vector<12x12xf32>, vector<12x16xf32>, vector<12x16xf32> -> vector<12x16xf32>
    %53 = vector.extract_strided_slice %33 {offsets = [0, 16], sizes = [12, 16], strides = [1, 1]} : vector<12x384xf32> to vector<12x16xf32>
    %54 = vector.extract_strided_slice %33 {offsets = [0, 144], sizes = [12, 16], strides = [1, 1]} : vector<12x384xf32> to vector<12x16xf32>
    %55 = vector.extract_strided_slice %33 {offsets = [0, 272], sizes = [12, 16], strides = [1, 1]} : vector<12x384xf32> to vector<12x16xf32>
    %cst_36 = arith.constant dense<0.000000e+00> : vector<12x12xf32>
    %56 = tpu.matmul %53, %54, %cst_36 {dimension_numbers = #tpu.dot_dimension_numbers<[1], [1], [0], [0], [0, 0, 1, 0], [], []>} : vector<12x16xf32>, vector<12x16xf32>, vector<12x12xf32> -> vector<12x12xf32>
    %cst_37 = arith.constant 2.500000e-01 : f32
    %57 = vector.broadcast %cst_37 : f32 to vector<12x12xf32>
    %58 = arith.mulf %56, %57 : vector<12x12xf32>
    %59 = arith.addf %58, %34 : vector<12x12xf32>
    %cst_38 = arith.constant dense<0xFF800000> : vector<12xf32>
    %60 = vector.multi_reduction <maximumf>, %59, %cst_38 [1] : vector<12x12xf32> to vector<12xf32>
    %61 = vector.shape_cast %60 : vector<12xf32> to vector<12x1xf32>
    %62 = vector.broadcast %61 : vector<12x1xf32> to vector<12x12xf32>
    %63 = arith.subf %59, %62 : vector<12x12xf32>
    %64 = math.exp %63 : vector<12x12xf32>
    %cst_39 = arith.constant dense<0.000000e+00> : vector<12xf32>
    %65 = vector.multi_reduction <add>, %64, %cst_39 [1] : vector<12x12xf32> to vector<12xf32>
    %66 = vector.shape_cast %65 : vector<12xf32> to vector<12x1xf32>
    %67 = tpu.reciprocal %66 {approx = true} : vector<12x1xf32> -> vector<12x1xf32>
    %68 = vector.broadcast %67 : vector<12x1xf32> to vector<12x12xf32>
    %69 = arith.mulf %64, %68 : vector<12x12xf32>
    %cst_40 = arith.constant dense<0.000000e+00> : vector<12x16xf32>
    %70 = tpu.matmul %69, %55, %cst_40 {dimension_numbers = #tpu.dot_dimension_numbers<[1], [0], [0], [1], [0, 0, 1, 1], [], []>} : vector<12x12xf32>, vector<12x16xf32>, vector<12x16xf32> -> vector<12x16xf32>
    %71 = vector.extract_strided_slice %33 {offsets = [0, 32], sizes = [12, 16], strides = [1, 1]} : vector<12x384xf32> to vector<12x16xf32>
    %72 = vector.extract_strided_slice %33 {offsets = [0, 160], sizes = [12, 16], strides = [1, 1]} : vector<12x384xf32> to vector<12x16xf32>
    %73 = vector.extract_strided_slice %33 {offsets = [0, 288], sizes = [12, 16], strides = [1, 1]} : vector<12x384xf32> to vector<12x16xf32>
    %cst_41 = arith.constant dense<0.000000e+00> : vector<12x12xf32>
    %74 = tpu.matmul %71, %72, %cst_41 {dimension_numbers = #tpu.dot_dimension_numbers<[1], [1], [0], [0], [0, 0, 1, 0], [], []>} : vector<12x16xf32>, vector<12x16xf32>, vector<12x12xf32> -> vector<12x12xf32>
    %cst_42 = arith.constant 2.500000e-01 : f32
    %75 = vector.broadcast %cst_42 : f32 to vector<12x12xf32>
    %76 = arith.mulf %74, %75 : vector<12x12xf32>
    %77 = arith.addf %76, %34 : vector<12x12xf32>
    %cst_43 = arith.constant dense<0xFF800000> : vector<12xf32>
    %78 = vector.multi_reduction <maximumf>, %77, %cst_43 [1] : vector<12x12xf32> to vector<12xf32>
    %79 = vector.shape_cast %78 : vector<12xf32> to vector<12x1xf32>
    %80 = vector.broadcast %79 : vector<12x1xf32> to vector<12x12xf32>
    %81 = arith.subf %77, %80 : vector<12x12xf32>
    %82 = math.exp %81 : vector<12x12xf32>
    %cst_44 = arith.constant dense<0.000000e+00> : vector<12xf32>
    %83 = vector.multi_reduction <add>, %82, %cst_44 [1] : vector<12x12xf32> to vector<12xf32>
    %84 = vector.shape_cast %83 : vector<12xf32> to vector<12x1xf32>
    %85 = tpu.reciprocal %84 {approx = true} : vector<12x1xf32> -> vector<12x1xf32>
    %86 = vector.broadcast %85 : vector<12x1xf32> to vector<12x12xf32>
    %87 = arith.mulf %82, %86 : vector<12x12xf32>
    %cst_45 = arith.constant dense<0.000000e+00> : vector<12x16xf32>
    %88 = tpu.matmul %87, %73, %cst_45 {dimension_numbers = #tpu.dot_dimension_numbers<[1], [0], [0], [1], [0, 0, 1, 1], [], []>} : vector<12x12xf32>, vector<12x16xf32>, vector<12x16xf32> -> vector<12x16xf32>
    %89 = vector.extract_strided_slice %33 {offsets = [0, 48], sizes = [12, 16], strides = [1, 1]} : vector<12x384xf32> to vector<12x16xf32>
    %90 = vector.extract_strided_slice %33 {offsets = [0, 176], sizes = [12, 16], strides = [1, 1]} : vector<12x384xf32> to vector<12x16xf32>
    %91 = vector.extract_strided_slice %33 {offsets = [0, 304], sizes = [12, 16], strides = [1, 1]} : vector<12x384xf32> to vector<12x16xf32>
    %cst_46 = arith.constant dense<0.000000e+00> : vector<12x12xf32>
    %92 = tpu.matmul %89, %90, %cst_46 {dimension_numbers = #tpu.dot_dimension_numbers<[1], [1], [0], [0], [0, 0, 1, 0], [], []>} : vector<12x16xf32>, vector<12x16xf32>, vector<12x12xf32> -> vector<12x12xf32>
    %cst_47 = arith.constant 2.500000e-01 : f32
    %93 = vector.broadcast %cst_47 : f32 to vector<12x12xf32>
    %94 = arith.mulf %92, %93 : vector<12x12xf32>
    %95 = arith.addf %94, %34 : vector<12x12xf32>
    %cst_48 = arith.constant dense<0xFF800000> : vector<12xf32>
    %96 = vector.multi_reduction <maximumf>, %95, %cst_48 [1] : vector<12x12xf32> to vector<12xf32>
    %97 = vector.shape_cast %96 : vector<12xf32> to vector<12x1xf32>
    %98 = vector.broadcast %97 : vector<12x1xf32> to vector<12x12xf32>
    %99 = arith.subf %95, %98 : vector<12x12xf32>
    %100 = math.exp %99 : vector<12x12xf32>
    %cst_49 = arith.constant dense<0.000000e+00> : vector<12xf32>
    %101 = vector.multi_reduction <add>, %100, %cst_49 [1] : vector<12x12xf32> to vector<12xf32>
    %102 = vector.shape_cast %101 : vector<12xf32> to vector<12x1xf32>
    %103 = tpu.reciprocal %102 {approx = true} : vector<12x1xf32> -> vector<12x1xf32>
    %104 = vector.broadcast %103 : vector<12x1xf32> to vector<12x12xf32>
    %105 = arith.mulf %100, %104 : vector<12x12xf32>
    %cst_50 = arith.constant dense<0.000000e+00> : vector<12x16xf32>
    %106 = tpu.matmul %105, %91, %cst_50 {dimension_numbers = #tpu.dot_dimension_numbers<[1], [0], [0], [1], [0, 0, 1, 1], [], []>} : vector<12x12xf32>, vector<12x16xf32>, vector<12x16xf32> -> vector<12x16xf32>
    %107 = vector.extract_strided_slice %33 {offsets = [0, 64], sizes = [12, 16], strides = [1, 1]} : vector<12x384xf32> to vector<12x16xf32>
    %108 = vector.extract_strided_slice %33 {offsets = [0, 192], sizes = [12, 16], strides = [1, 1]} : vector<12x384xf32> to vector<12x16xf32>
    %109 = vector.extract_strided_slice %33 {offsets = [0, 320], sizes = [12, 16], strides = [1, 1]} : vector<12x384xf32> to vector<12x16xf32>
    %cst_51 = arith.constant dense<0.000000e+00> : vector<12x12xf32>
    %110 = tpu.matmul %107, %108, %cst_51 {dimension_numbers = #tpu.dot_dimension_numbers<[1], [1], [0], [0], [0, 0, 1, 0], [], []>} : vector<12x16xf32>, vector<12x16xf32>, vector<12x12xf32> -> vector<12x12xf32>
    %cst_52 = arith.constant 2.500000e-01 : f32
    %111 = vector.broadcast %cst_52 : f32 to vector<12x12xf32>
    %112 = arith.mulf %110, %111 : vector<12x12xf32>
    %113 = arith.addf %112, %34 : vector<12x12xf32>
    %cst_53 = arith.constant dense<0xFF800000> : vector<12xf32>
    %114 = vector.multi_reduction <maximumf>, %113, %cst_53 [1] : vector<12x12xf32> to vector<12xf32>
    %115 = vector.shape_cast %114 : vector<12xf32> to vector<12x1xf32>
    %116 = vector.broadcast %115 : vector<12x1xf32> to vector<12x12xf32>
    %117 = arith.subf %113, %116 : vector<12x12xf32>
    %118 = math.exp %117 : vector<12x12xf32>
    %cst_54 = arith.constant dense<0.000000e+00> : vector<12xf32>
    %119 = vector.multi_reduction <add>, %118, %cst_54 [1] : vector<12x12xf32> to vector<12xf32>
    %120 = vector.shape_cast %119 : vector<12xf32> to vector<12x1xf32>
    %121 = tpu.reciprocal %120 {approx = true} : vector<12x1xf32> -> vector<12x1xf32>
    %122 = vector.broadcast %121 : vector<12x1xf32> to vector<12x12xf32>
    %123 = arith.mulf %118, %122 : vector<12x12xf32>
    %cst_55 = arith.constant dense<0.000000e+00> : vector<12x16xf32>
    %124 = tpu.matmul %123, %109, %cst_55 {dimension_numbers = #tpu.dot_dimension_numbers<[1], [0], [0], [1], [0, 0, 1, 1], [], []>} : vector<12x12xf32>, vector<12x16xf32>, vector<12x16xf32> -> vector<12x16xf32>
    %125 = vector.extract_strided_slice %33 {offsets = [0, 80], sizes = [12, 16], strides = [1, 1]} : vector<12x384xf32> to vector<12x16xf32>
    %126 = vector.extract_strided_slice %33 {offsets = [0, 208], sizes = [12, 16], strides = [1, 1]} : vector<12x384xf32> to vector<12x16xf32>
    %127 = vector.extract_strided_slice %33 {offsets = [0, 336], sizes = [12, 16], strides = [1, 1]} : vector<12x384xf32> to vector<12x16xf32>
    %cst_56 = arith.constant dense<0.000000e+00> : vector<12x12xf32>
    %128 = tpu.matmul %125, %126, %cst_56 {dimension_numbers = #tpu.dot_dimension_numbers<[1], [1], [0], [0], [0, 0, 1, 0], [], []>} : vector<12x16xf32>, vector<12x16xf32>, vector<12x12xf32> -> vector<12x12xf32>
    %cst_57 = arith.constant 2.500000e-01 : f32
    %129 = vector.broadcast %cst_57 : f32 to vector<12x12xf32>
    %130 = arith.mulf %128, %129 : vector<12x12xf32>
    %131 = arith.addf %130, %34 : vector<12x12xf32>
    %cst_58 = arith.constant dense<0xFF800000> : vector<12xf32>
    %132 = vector.multi_reduction <maximumf>, %131, %cst_58 [1] : vector<12x12xf32> to vector<12xf32>
    %133 = vector.shape_cast %132 : vector<12xf32> to vector<12x1xf32>
    %134 = vector.broadcast %133 : vector<12x1xf32> to vector<12x12xf32>
    %135 = arith.subf %131, %134 : vector<12x12xf32>
    %136 = math.exp %135 : vector<12x12xf32>
    %cst_59 = arith.constant dense<0.000000e+00> : vector<12xf32>
    %137 = vector.multi_reduction <add>, %136, %cst_59 [1] : vector<12x12xf32> to vector<12xf32>
    %138 = vector.shape_cast %137 : vector<12xf32> to vector<12x1xf32>
    %139 = tpu.reciprocal %138 {approx = true} : vector<12x1xf32> -> vector<12x1xf32>
    %140 = vector.broadcast %139 : vector<12x1xf32> to vector<12x12xf32>
    %141 = arith.mulf %136, %140 : vector<12x12xf32>
    %cst_60 = arith.constant dense<0.000000e+00> : vector<12x16xf32>
    %142 = tpu.matmul %141, %127, %cst_60 {dimension_numbers = #tpu.dot_dimension_numbers<[1], [0], [0], [1], [0, 0, 1, 1], [], []>} : vector<12x12xf32>, vector<12x16xf32>, vector<12x16xf32> -> vector<12x16xf32>
    %143 = vector.extract_strided_slice %33 {offsets = [0, 96], sizes = [12, 16], strides = [1, 1]} : vector<12x384xf32> to vector<12x16xf32>
    %144 = vector.extract_strided_slice %33 {offsets = [0, 224], sizes = [12, 16], strides = [1, 1]} : vector<12x384xf32> to vector<12x16xf32>
    %145 = vector.extract_strided_slice %33 {offsets = [0, 352], sizes = [12, 16], strides = [1, 1]} : vector<12x384xf32> to vector<12x16xf32>
    %cst_61 = arith.constant dense<0.000000e+00> : vector<12x12xf32>
    %146 = tpu.matmul %143, %144, %cst_61 {dimension_numbers = #tpu.dot_dimension_numbers<[1], [1], [0], [0], [0, 0, 1, 0], [], []>} : vector<12x16xf32>, vector<12x16xf32>, vector<12x12xf32> -> vector<12x12xf32>
    %cst_62 = arith.constant 2.500000e-01 : f32
    %147 = vector.broadcast %cst_62 : f32 to vector<12x12xf32>
    %148 = arith.mulf %146, %147 : vector<12x12xf32>
    %149 = arith.addf %148, %34 : vector<12x12xf32>
    %cst_63 = arith.constant dense<0xFF800000> : vector<12xf32>
    %150 = vector.multi_reduction <maximumf>, %149, %cst_63 [1] : vector<12x12xf32> to vector<12xf32>
    %151 = vector.shape_cast %150 : vector<12xf32> to vector<12x1xf32>
    %152 = vector.broadcast %151 : vector<12x1xf32> to vector<12x12xf32>
    %153 = arith.subf %149, %152 : vector<12x12xf32>
    %154 = math.exp %153 : vector<12x12xf32>
    %cst_64 = arith.constant dense<0.000000e+00> : vector<12xf32>
    %155 = vector.multi_reduction <add>, %154, %cst_64 [1] : vector<12x12xf32> to vector<12xf32>
    %156 = vector.shape_cast %155 : vector<12xf32> to vector<12x1xf32>
    %157 = tpu.reciprocal %156 {approx = true} : vector<12x1xf32> -> vector<12x1xf32>
    %158 = vector.broadcast %157 : vector<12x1xf32> to vector<12x12xf32>
    %159 = arith.mulf %154, %158 : vector<12x12xf32>
    %cst_65 = arith.constant dense<0.000000e+00> : vector<12x16xf32>
    %160 = tpu.matmul %159, %145, %cst_65 {dimension_numbers = #tpu.dot_dimension_numbers<[1], [0], [0], [1], [0, 0, 1, 1], [], []>} : vector<12x12xf32>, vector<12x16xf32>, vector<12x16xf32> -> vector<12x16xf32>
    %161 = vector.extract_strided_slice %33 {offsets = [0, 112], sizes = [12, 16], strides = [1, 1]} : vector<12x384xf32> to vector<12x16xf32>
    %162 = vector.extract_strided_slice %33 {offsets = [0, 240], sizes = [12, 16], strides = [1, 1]} : vector<12x384xf32> to vector<12x16xf32>
    %163 = vector.extract_strided_slice %33 {offsets = [0, 368], sizes = [12, 16], strides = [1, 1]} : vector<12x384xf32> to vector<12x16xf32>
    %cst_66 = arith.constant dense<0.000000e+00> : vector<12x12xf32>
    %164 = tpu.matmul %161, %162, %cst_66 {dimension_numbers = #tpu.dot_dimension_numbers<[1], [1], [0], [0], [0, 0, 1, 0], [], []>} : vector<12x16xf32>, vector<12x16xf32>, vector<12x12xf32> -> vector<12x12xf32>
    %cst_67 = arith.constant 2.500000e-01 : f32
    %165 = vector.broadcast %cst_67 : f32 to vector<12x12xf32>
    %166 = arith.mulf %164, %165 : vector<12x12xf32>
    %167 = arith.addf %166, %34 : vector<12x12xf32>
    %cst_68 = arith.constant dense<0xFF800000> : vector<12xf32>
    %168 = vector.multi_reduction <maximumf>, %167, %cst_68 [1] : vector<12x12xf32> to vector<12xf32>
    %169 = vector.shape_cast %168 : vector<12xf32> to vector<12x1xf32>
    %170 = vector.broadcast %169 : vector<12x1xf32> to vector<12x12xf32>
    %171 = arith.subf %167, %170 : vector<12x12xf32>
    %172 = math.exp %171 : vector<12x12xf32>
    %cst_69 = arith.constant dense<0.000000e+00> : vector<12xf32>
    %173 = vector.multi_reduction <add>, %172, %cst_69 [1] : vector<12x12xf32> to vector<12xf32>
    %174 = vector.shape_cast %173 : vector<12xf32> to vector<12x1xf32>
    %175 = tpu.reciprocal %174 {approx = true} : vector<12x1xf32> -> vector<12x1xf32>
    %176 = vector.broadcast %175 : vector<12x1xf32> to vector<12x12xf32>
    %177 = arith.mulf %172, %176 : vector<12x12xf32>
    %cst_70 = arith.constant dense<0.000000e+00> : vector<12x16xf32>
    %178 = tpu.matmul %177, %163, %cst_70 {dimension_numbers = #tpu.dot_dimension_numbers<[1], [0], [0], [1], [0, 0, 1, 1], [], []>} : vector<12x12xf32>, vector<12x16xf32>, vector<12x16xf32> -> vector<12x16xf32>
    %179 = tpu.concatenate %52, %70, %88, %106, %124, %142, %160, %178 in 1 : vector<12x16xf32>, vector<12x16xf32>, vector<12x16xf32>, vector<12x16xf32>, vector<12x16xf32>, vector<12x16xf32>, vector<12x16xf32>, vector<12x16xf32> -> vector<12x128xf32>
    %c0_71 = arith.constant 0 : index
    %c0_72 = arith.constant 0 : index
    %180 = vector.load %arg13[%c0_71, %c0_72] : memref<128x128xf32, #tpu.memory_space<vmem>>, vector<128x128xf32>
    %cst_73 = arith.constant dense<0.000000e+00> : vector<12x128xf32>
    %181 = tpu.matmul %179, %180, %cst_73 {dimension_numbers = #tpu.dot_dimension_numbers<[1], [0], [0], [1], [0, 0, 1, 1], [], []>} : vector<12x128xf32>, vector<128x128xf32>, vector<12x128xf32> -> vector<12x128xf32>
    %c0_74 = arith.constant 0 : index
    %c0_75 = arith.constant 0 : index
    %182 = vector.load %arg14[%c0_74, %c0_75] : memref<1x128xf32, #tpu.memory_space<vmem>>, vector<1x128xf32>
    %183 = vector.broadcast %182 : vector<1x128xf32> to vector<12x128xf32>
    %184 = arith.addf %181, %183 : vector<12x128xf32>
    %185 = vector.extract_strided_slice %184 {offsets = [0, 0], sizes = [4, 128], strides = [1, 1]} : vector<12x128xf32> to vector<4x128xf32>
    %186 = vector.extract_strided_slice %184 {offsets = [4, 0], sizes = [4, 128], strides = [1, 1]} : vector<12x128xf32> to vector<4x128xf32>
    %187 = arith.addf %185, %186 : vector<4x128xf32>
    %188 = vector.extract_strided_slice %184 {offsets = [8, 0], sizes = [4, 128], strides = [1, 1]} : vector<12x128xf32> to vector<4x128xf32>
    %189 = arith.addf %187, %188 : vector<4x128xf32>
    %cst_76 = arith.constant 0.333333343 : f32
    %190 = vector.broadcast %cst_76 : f32 to vector<4x128xf32>
    %191 = arith.mulf %189, %190 : vector<4x128xf32>
    %c0_77 = arith.constant 0 : index
    %c0_78 = arith.constant 0 : index
    %192 = vector.load %arg15[%c0_77, %c0_78] : memref<128x128xf32, #tpu.memory_space<vmem>>, vector<128x128xf32>
    %cst_79 = arith.constant dense<0.000000e+00> : vector<4x128xf32>
    %193 = tpu.matmul %191, %192, %cst_79 {dimension_numbers = #tpu.dot_dimension_numbers<[1], [0], [0], [1], [0, 0, 1, 1], [], []>} : vector<4x128xf32>, vector<128x128xf32>, vector<4x128xf32> -> vector<4x128xf32>
    %c0_80 = arith.constant 0 : index
    %c0_81 = arith.constant 0 : index
    %194 = vector.load %arg16[%c0_80, %c0_81] : memref<1x128xf32, #tpu.memory_space<vmem>>, vector<1x128xf32>
    %195 = vector.broadcast %194 : vector<1x128xf32> to vector<4x128xf32>
    %196 = arith.addf %193, %195 : vector<4x128xf32>
    %cst_82 = arith.constant 0.000000e+00 : f32
    %197 = vector.broadcast %cst_82 : f32 to vector<4x128xf32>
    %198 = arith.maximumf %196, %197 : vector<4x128xf32>
    %c0_83 = arith.constant 0 : index
    %c0_84 = arith.constant 0 : index
    %199 = vector.load %arg17[%c0_83, %c0_84] : memref<128x128xf32, #tpu.memory_space<vmem>>, vector<128x128xf32>
    %cst_85 = arith.constant dense<0.000000e+00> : vector<4x128xf32>
    %200 = tpu.matmul %198, %199, %cst_85 {dimension_numbers = #tpu.dot_dimension_numbers<[1], [0], [0], [1], [0, 0, 1, 1], [], []>} : vector<4x128xf32>, vector<128x128xf32>, vector<4x128xf32> -> vector<4x128xf32>
    %c0_86 = arith.constant 0 : index
    %c0_87 = arith.constant 0 : index
    %201 = vector.load %arg18[%c0_86, %c0_87] : memref<1x128xf32, #tpu.memory_space<vmem>>, vector<1x128xf32>
    %202 = vector.broadcast %201 : vector<1x128xf32> to vector<4x128xf32>
    %203 = arith.addf %200, %202 : vector<4x128xf32>
    %c0_88 = arith.constant 0 : index
    %c0_89 = arith.constant 0 : index
    %204 = vector.load %arg19[%c0_88, %c0_89] : memref<4x128xf32, #tpu.memory_space<vmem>>, vector<4x128xf32>
    tpu.vector_store %arg19[%c0_88, %c0_89], %203 {strides = array<i32>} : memref<4x128xf32, #tpu.memory_space<vmem>>, vector<4x128xf32>,
    return
  }
  func.func @transform_0(%arg0: i32) -> (i32, i32) {
    %c0_i32 = arith.constant 0 : i32
    %c0_i32_0 = arith.constant 0 : i32
    %c0_i32_1 = arith.constant 0 : i32
    return %c0_i32, %c0_i32_0 : i32, i32
  }
  func.func @transform_1(%arg0: i32) -> (i32, i32) {
    %c0_i32 = arith.constant 0 : i32
    %c0_i32_0 = arith.constant 0 : i32
    return %arg0, %c0_i32 : i32, i32
  }
  func.func @transform_2(%arg0: i32) -> (i32, i32) {
    %c0_i32 = arith.constant 0 : i32
    %c0_i32_0 = arith.constant 0 : i32
    return %arg0, %c0_i32 : i32, i32
  }
  func.func @transform_3(%arg0: i32) -> (i32, i32) {
    %c0_i32 = arith.constant 0 : i32
    %c0_i32_0 = arith.constant 0 : i32
    return %arg0, %c0_i32 : i32, i32
  }
  func.func @transform_4(%arg0: i32) -> (i32, i32) {
    %c0_i32 = arith.constant 0 : i32
    %c0_i32_0 = arith.constant 0 : i32
    %c0_i32_1 = arith.constant 0 : i32
    return %c0_i32, %c0_i32_0 : i32, i32
  }
  func.func @transform_5(%arg0: i32) -> (i32, i32) {
    %c0_i32 = arith.constant 0 : i32
    %c0_i32_0 = arith.constant 0 : i32
    %c0_i32_1 = arith.constant 0 : i32
    return %c0_i32, %c0_i32_0 : i32, i32
  }
  func.func @transform_6(%arg0: i32) -> (i32, i32) {
    %c0_i32 = arith.constant 0 : i32
    %c0_i32_0 = arith.constant 0 : i32
    %c0_i32_1 = arith.constant 0 : i32
    return %c0_i32, %c0_i32_0 : i32, i32
  }
  func.func @transform_7(%arg0: i32) -> (i32, i32) {
    %c0_i32 = arith.constant 0 : i32
    %c0_i32_0 = arith.constant 0 : i32
    %c0_i32_1 = arith.constant 0 : i32
    return %c0_i32, %c0_i32_0 : i32, i32
  }
  func.func @transform_8(%arg0: i32) -> (i32, i32) {
    %c0_i32 = arith.constant 0 : i32
    %c0_i32_0 = arith.constant 0 : i32
    %c0_i32_1 = arith.constant 0 : i32
    return %c0_i32, %c0_i32_0 : i32, i32
  }
  func.func @transform_9(%arg0: i32) -> (i32, i32) {
    %c0_i32 = arith.constant 0 : i32
    %c0_i32_0 = arith.constant 0 : i32
    %c0_i32_1 = arith.constant 0 : i32
    return %c0_i32, %c0_i32_0 : i32, i32
  }
  func.func @transform_10(%arg0: i32) -> (i32, i32) {
    %c0_i32 = arith.constant 0 : i32
    %c0_i32_0 = arith.constant 0 : i32
    %c0_i32_1 = arith.constant 0 : i32
    return %c0_i32, %c0_i32_0 : i32, i32
  }
  func.func @transform_11(%arg0: i32) -> (i32, i32) {
    %c0_i32 = arith.constant 0 : i32
    %c0_i32_0 = arith.constant 0 : i32
    %c0_i32_1 = arith.constant 0 : i32
    return %c0_i32, %c0_i32_0 : i32, i32
  }
  func.func @transform_12(%arg0: i32) -> (i32, i32) {
    %c0_i32 = arith.constant 0 : i32
    %c0_i32_0 = arith.constant 0 : i32
    %c0_i32_1 = arith.constant 0 : i32
    return %c0_i32, %c0_i32_0 : i32, i32
  }
  func.func @transform_13(%arg0: i32) -> (i32, i32) {
    %c0_i32 = arith.constant 0 : i32
    %c0_i32_0 = arith.constant 0 : i32
    %c0_i32_1 = arith.constant 0 : i32
    return %c0_i32, %c0_i32_0 : i32, i32
  }
  func.func @transform_14(%arg0: i32) -> (i32, i32) {
    %c0_i32 = arith.constant 0 : i32
    %c0_i32_0 = arith.constant 0 : i32
    %c0_i32_1 = arith.constant 0 : i32
    return %c0_i32, %c0_i32_0 : i32, i32
  }
  func.func @transform_15(%arg0: i32) -> (i32, i32) {
    %c0_i32 = arith.constant 0 : i32
    %c0_i32_0 = arith.constant 0 : i32
    %c0_i32_1 = arith.constant 0 : i32
    return %c0_i32, %c0_i32_0 : i32, i32
  }
  func.func @transform_16(%arg0: i32) -> (i32, i32) {
    %c0_i32 = arith.constant 0 : i32
    %c0_i32_0 = arith.constant 0 : i32
    %c0_i32_1 = arith.constant 0 : i32
    return %c0_i32, %c0_i32_0 : i32, i32
  }
  func.func @transform_17(%arg0: i32) -> (i32, i32) {
    %c0_i32 = arith.constant 0 : i32
    %c0_i32_0 = arith.constant 0 : i32
    %c0_i32_1 = arith.constant 0 : i32
    return %c0_i32, %c0_i32_0 : i32, i32
  }
  func.func @transform_18(%arg0: i32) -> (i32, i32) {
    %c0_i32 = arith.constant 0 : i32
    %c0_i32_0 = arith.constant 0 : i32
    return %arg0, %c0_i32 : i32, i32
  }
}

</mosaic_0001>

<llo_original>
// kernel: tpu_custom_call.1
$region0: #{tpu_custom_call.1}
  #allocation0 [shape = 'u32[]', space=smem, size = 0x4, offset = 0x4, fixed_abs, tag = 'smem constant byte address 0x4 - core index']
  #allocation1 [shape = 'u32[72,128]{1,0:T(1,128)}', space=vmem, size = 0x9000, scoped, tag = 'internal scratch']
  %s0 = inlined_call_operand.hbm [shape: f32[12,12], index: 0, kind: input, shape index: {}]
  %s1 = inlined_call_operand.hbm [shape: f32[4,64], index: 1, kind: input, shape index: {}]
  %s2 = inlined_call_operand.hbm [shape: f32[4,48], index: 2, kind: input, shape index: {}]
  %s3 = inlined_call_operand.hbm [shape: f32[4,32], index: 3, kind: input, shape index: {}]
  %s4 = inlined_call_operand.hbm [shape: f32[64,128], index: 4, kind: input, shape index: {}]
  %s5 = inlined_call_operand.hbm [shape: f32[48,128], index: 5, kind: input, shape index: {}]
  %s6 = inlined_call_operand.hbm [shape: f32[32,128], index: 6, kind: input, shape index: {}]
  %s7 = inlined_call_operand.vmem [shape: f32[1,128], index: 7, kind: input, shape index: {}]
  %s8 = inlined_call_operand.vmem [shape: f32[1,128], index: 8, kind: input, shape index: {}]
  %s9 = inlined_call_operand.vmem [shape: f32[1,128], index: 9, kind: input, shape index: {}]
  %s10 = inlined_call_operand.hbm [shape: f32[128,384], index: 10, kind: input, shape index: {}]
  %s11 = inlined_call_operand.vmem [shape: f32[1,384], index: 11, kind: input, shape index: {}]
  %s12 = inlined_call_operand.hbm [shape: f32[128,128], index: 12, kind: input, shape index: {}]
  %s13 = inlined_call_operand.vmem [shape: f32[1,128], index: 13, kind: input, shape index: {}]
  %s14 = inlined_call_operand.hbm [shape: f32[128,128], index: 14, kind: input, shape index: {}]
  %s15 = inlined_call_operand.vmem [shape: f32[1,128], index: 15, kind: input, shape index: {}]
  %s16 = inlined_call_operand.hbm [shape: f32[128,128], index: 16, kind: input, shape index: {}]
  %s17 = inlined_call_operand.vmem [shape: f32[1,128], index: 17, kind: input, shape index: {}]
  %s18 = inlined_call_operand.hbm [shape: f32[4,128], index: 18, kind: output, shape index: {}]
  %s19 = sld [smem:[#allocation0]]
  $region126: #{tpu_custom_call.1} parent=0
    _
  %s21 = ssub.s32 1, %s19
  %s22 = scalar_select 0, %s21, %s19
  $region1: #{tpu_custom_call.1} parent=0
    #allocation2 [shape = 'u8[8192]{0}', space=vmem, size = 0x2000, scoped, tag = 'input window, operand 0, single buffered']
    #allocation3 [shape = 's32[1]{0}', space=sflag, size = 0x4, scoped, tag = 'scoped memory for tpu_custom_call.1']
    #allocation4 [shape = 's32[1]{0}', space=sflag, size = 0x4, scoped, tag = 'scoped memory for tpu_custom_call.1']
    #allocation5 [shape = 'u8[2048]{0}', space=vmem, size = 0x800, scoped, tag = 'input window, operand 1, single buffered']
    #allocation6 [shape = 's32[1]{0}', space=sflag, size = 0x4, scoped, tag = 'scoped memory for tpu_custom_call.1']
    #allocation7 [shape = 'u8[2048]{0}', space=vmem, size = 0x800, scoped, tag = 'input window, operand 2, single buffered']
    #allocation8 [shape = 'u8[2048]{0}', space=vmem, size = 0x800, scoped, tag = 'input window, operand 3, single buffered']
    #allocation9 [shape = 's32[1]{0}', space=sflag, size = 0x4, scoped, tag = 'scoped memory for tpu_custom_call.1']
    #allocation10 [shape = 'u8[32768]{0}', space=vmem, size = 0x8000, scoped, tag = 'input window, operand 4, single buffered']
    #allocation11 [shape = 'u8[24576]{0}', space=vmem, size = 0x6000, scoped, tag = 'input window, operand 5, single buffered']
    #allocation12 [shape = 's32[1]{0}', space=sflag, size = 0x4, scoped, tag = 'scoped memory for tpu_custom_call.1']
    #allocation13 [shape = 'u8[16384]{0}', space=vmem, size = 0x4000, scoped, tag = 'input window, operand 6, single buffered']
    #allocation14 [shape = 'u8[196608]{0}', space=vmem, size = 0x30000, scoped, tag = 'input window, operand 10, single buffered']
    #allocation15 [shape = 's32[1]{0}', space=sflag, size = 0x4, scoped, tag = 'scoped memory for tpu_custom_call.1']
    #allocation16 [shape = 'u8[65536]{0}', space=vmem, size = 0x10000, scoped, tag = 'input window, operand 12, single buffered']
    #allocation17 [shape = 'u8[65536]{0}', space=vmem, size = 0x10000, scoped, tag = 'input window, operand 14, single buffered']
    #allocation18 [shape = 's32[1]{0}', space=sflag, size = 0x4, scoped, tag = 'scoped memory for tpu_custom_call.1']
    #allocation19 [shape = 'u8[65536]{0}', space=vmem, size = 0x10000, scoped, tag = 'input window, operand 16, single buffered']
    #allocation20 [shape = 'u8[2048]{0}', space=vmem, size = 0x800, scoped, tag = 'output window, operand 0, single buffered']
    %23 = vsyncpa [#allocation3], 0
    %24 = vsyncpa [#allocation6], 0
    %25 = vsyncpa [#allocation9], 0
    %26 = vsyncpa [#allocation12], 0
    %27 = vsyncpa [#allocation15], 0
    %28 = vsyncpa [#allocation18], 0
    %29 = vsyncpa [#allocation4], 0
    // Predicated region
    $region2: #{tpu_custom_call.1} parent=1 // pred_check
      _
    $region3: #{tpu_custom_call.1} parent=1 // pred_check_branch
      %31 = sbr.rel (0) target = $region5
    $region4: #{tpu_custom_call.1} parent=1 // pred_region
      %33 = vsyncadd [#allocation3], 0
      %s34 = sshll.u32 %s0, 4
      %s35 = int_to_ptr.hbm [resolvable:$true] %s34
      %s36 = sshll.u32 [#allocation2], 4
      %s37 = int_to_ptr.vmem [resolvable:$true] %s36
      %42 = dma.hbm_to_vmem [thread:$0]  %s35, 256, %s37, [#allocation3], 128, 128, 8
    $region5: #{tpu_custom_call.1} parent=1 // pred_fallthru
      _
    // Predicated region
    $region6: #{tpu_custom_call.1} parent=1 // pred_check
      _
    $region7: #{tpu_custom_call.1} parent=1 // pred_check_branch
      %44 = sbr.rel (0) target = $region9
    $region8: #{tpu_custom_call.1} parent=1 // pred_region
      %46 = vsyncadd [#allocation6], 0
      %s48 = sshll.u32 %s1, 4
      %s49 = int_to_ptr.hbm [resolvable:$true] %s48
      %s50 = sshll.u32 [#allocation5], 4
      %s51 = int_to_ptr.vmem [resolvable:$true] %s50
      %53 = dma.hbm_to_vmem [thread:$0]  %s49, 64, %s51, [#allocation6]
    $region9: #{tpu_custom_call.1} parent=1 // pred_fallthru
      _
    // Predicated region
    $region10: #{tpu_custom_call.1} parent=1 // pred_check
      _
    $region11: #{tpu_custom_call.1} parent=1 // pred_check_branch
      %55 = sbr.rel (0) target = $region13
    $region12: #{tpu_custom_call.1} parent=1 // pred_region
      %57 = vsyncadd [#allocation6], 0
      %s59 = sshll.u32 %s2, 4
      %s60 = int_to_ptr.hbm [resolvable:$true] %s59
      %s61 = sshll.u32 [#allocation7], 4
      %s62 = int_to_ptr.vmem [resolvable:$true] %s61
      %64 = dma.hbm_to_vmem [thread:$0]  %s60, 64, %s62, [#allocation6]
    $region13: #{tpu_custom_call.1} parent=1 // pred_fallthru
      _
    // Predicated region
    $region14: #{tpu_custom_call.1} parent=1 // pred_check
      _
    $region15: #{tpu_custom_call.1} parent=1 // pred_check_branch
      %66 = sbr.rel (0) target = $region17
    $region16: #{tpu_custom_call.1} parent=1 // pred_region
      %68 = vsyncadd [#allocation9], 0
      %s70 = sshll.u32 %s3, 4
      %s71 = int_to_ptr.hbm [resolvable:$true] %s70
      %s72 = sshll.u32 [#allocation8], 4
      %s73 = int_to_ptr.vmem [resolvable:$true] %s72
      %75 = dma.hbm_to_vmem [thread:$0]  %s71, 64, %s73, [#allocation9]
    $region17: #{tpu_custom_call.1} parent=1 // pred_fallthru
      _
    // Predicated region
    $region18: #{tpu_custom_call.1} parent=1 // pred_check
      _
    $region19: #{tpu_custom_call.1} parent=1 // pred_check_branch
      %77 = sbr.rel (0) target = $region21
    $region20: #{tpu_custom_call.1} parent=1 // pred_region
      %79 = vsyncadd [#allocation9], 0
      %s80 = sshll.u32 %s4, 4
      %s81 = int_to_ptr.hbm [resolvable:$true] %s80
      %s82 = sshll.u32 [#allocation10], 4
      %s83 = int_to_ptr.vmem [resolvable:$true] %s82
      %88 = dma.hbm_to_vmem [thread:$0]  %s81, 1024, %s83, [#allocation9], 128, 128, 8
    $region21: #{tpu_custom_call.1} parent=1 // pred_fallthru
      _
    // Predicated region
    $region22: #{tpu_custom_call.1} parent=1 // pred_check
      _
    $region23: #{tpu_custom_call.1} parent=1 // pred_check_branch
      %90 = sbr.rel (0) target = $region25
    $region24: #{tpu_custom_call.1} parent=1 // pred_region
      %92 = vsyncadd [#allocation12], 0
      %s93 = sshll.u32 %s5, 4
      %s94 = int_to_ptr.hbm [resolvable:$true] %s93
      %s95 = sshll.u32 [#allocation11], 4
      %s96 = int_to_ptr.vmem [resolvable:$true] %s95
      %101 = dma.hbm_to_vmem [thread:$0]  %s94, 768, %s96, [#allocation12], 128, 128, 8
    $region25: #{tpu_custom_call.1} parent=1 // pred_fallthru
      _
    // Predicated region
    $region26: #{tpu_custom_call.1} parent=1 // pred_check
      _
    $region27: #{tpu_custom_call.1} parent=1 // pred_check_branch
      %103 = sbr.rel (0) target = $region29
    $region28: #{tpu_custom_call.1} parent=1 // pred_region
      %105 = vsyncadd [#allocation12], 0
      %s106 = sshll.u32 %s6, 4
      %s107 = int_to_ptr.hbm [resolvable:$true] %s106
      %s108 = sshll.u32 [#allocation13], 4
      %s109 = int_to_ptr.vmem [resolvable:$true] %s108
      %114 = dma.hbm_to_vmem [thread:$0]  %s107, 512, %s109, [#allocation12], 128, 128, 8
    $region29: #{tpu_custom_call.1} parent=1 // pred_fallthru
      _
    // Predicated region
    $region30: #{tpu_custom_call.1} parent=1 // pred_check
      _
    $region31: #{tpu_custom_call.1} parent=1 // pred_check_branch
      %116 = sbr.rel (0) target = $region33
    $region32: #{tpu_custom_call.1} parent=1 // pred_region
      _
    $region33: #{tpu_custom_call.1} parent=1 // pred_fallthru
      _
    // Predicated region
    $region34: #{tpu_custom_call.1} parent=1 // pred_check
      _
    $region35: #{tpu_custom_call.1} parent=1 // pred_check_branch
      %118 = sbr.rel (0) target = $region37
    $region36: #{tpu_custom_call.1} parent=1 // pred_region
      _
    $region37: #{tpu_custom_call.1} parent=1 // pred_fallthru
      _
    // Predicated region
    $region38: #{tpu_custom_call.1} parent=1 // pred_check
      _
    $region39: #{tpu_custom_call.1} parent=1 // pred_check_branch
      %120 = sbr.rel (0) target = $region41
    $region40: #{tpu_custom_call.1} parent=1 // pred_region
      _
    $region41: #{tpu_custom_call.1} parent=1 // pred_fallthru
      _
    // Predicated region
    $region42: #{tpu_custom_call.1} parent=1 // pred_check
      _
    $region43: #{tpu_custom_call.1} parent=1 // pred_check_branch
      %122 = sbr.rel (0) target = $region45
    $region44: #{tpu_custom_call.1} parent=1 // pred_region
      %124 = vsyncadd [#allocation15], 0
      %s125 = sshll.u32 %s10, 4
      %s126 = int_to_ptr.hbm [resolvable:$true] %s125
      %s127 = sshll.u32 [#allocation14], 4
      %s128 = int_to_ptr.vmem [resolvable:$true] %s127
      %133 = dma.hbm_to_vmem [thread:$0]  %s126, 6144, %s128, [#allocation15], 384, 384, 24
    $region45: #{tpu_custom_call.1} parent=1 // pred_fallthru
      _
    // Predicated region
    $region46: #{tpu_custom_call.1} parent=1 // pred_check
      _
    $region47: #{tpu_custom_call.1} parent=1 // pred_check_branch
      %135 = sbr.rel (0) target = $region49
    $region48: #{tpu_custom_call.1} parent=1 // pred_region
      _
    $region49: #{tpu_custom_call.1} parent=1 // pred_fallthru
      _
    // Predicated region
    $region50: #{tpu_custom_call.1} parent=1 // pred_check
      _
    $region51: #{tpu_custom_call.1} parent=1 // pred_check_branch
      %137 = sbr.rel (0) target = $region53
    $region52: #{tpu_custom_call.1} parent=1 // pred_region
      %139 = vsyncadd [#allocation15], 0
      %s140 = sshll.u32 %s12, 4
      %s141 = int_to_ptr.hbm [resolvable:$true] %s140
      %s142 = sshll.u32 [#allocation16], 4
      %s143 = int_to_ptr.vmem [resolvable:$true] %s142
      %148 = dma.hbm_to_vmem [thread:$0]  %s141, 2048, %s143, [#allocation15], 128, 128, 8
    $region53: #{tpu_custom_call.1} parent=1 // pred_fallthru
      _
    // Predicated region
    $region54: #{tpu_custom_call.1} parent=1 // pred_check
      _
    $region55: #{tpu_custom_call.1} parent=1 // pred_check_branch
      %150 = sbr.rel (0) target = $region57
    $region56: #{tpu_custom_call.1} parent=1 // pred_region
      _
    $region57: #{tpu_custom_call.1} parent=1 // pred_fallthru
      _
    // Predicated region
    $region58: #{tpu_custom_call.1} parent=1 // pred_check
      _
    $region59: #{tpu_custom_call.1} parent=1 // pred_check_branch
      %152 = sbr.rel (0) target = $region61
    $region60: #{tpu_custom_call.1} parent=1 // pred_region
      %154 = vsyncadd [#allocation18], 0
      %s155 = sshll.u32 %s14, 4
      %s156 = int_to_ptr.hbm [resolvable:$true] %s155
      %s157 = sshll.u32 [#allocation17], 4
      %s158 = int_to_ptr.vmem [resolvable:$true] %s157
      %163 = dma.hbm_to_vmem [thread:$0]  %s156, 2048, %s158, [#allocation18], 128, 128, 8
    $region61: #{tpu_custom_call.1} parent=1 // pred_fallthru
      _
    // Predicated region
    $region62: #{tpu_custom_call.1} parent=1 // pred_check
      _
    $region63: #{tpu_custom_call.1} parent=1 // pred_check_branch
      %165 = sbr.rel (0) target = $region65
    $region64: #{tpu_custom_call.1} parent=1 // pred_region
      _
    $region65: #{tpu_custom_call.1} parent=1 // pred_fallthru
      _
    // Predicated region
    $region66: #{tpu_custom_call.1} parent=1 // pred_check
      _
    $region67: #{tpu_custom_call.1} parent=1 // pred_check_branch
      %167 = sbr.rel (0) target = $region69
    $region68: #{tpu_custom_call.1} parent=1 // pred_region
      %169 = vsyncadd [#allocation18], 0
      %s170 = sshll.u32 %s16, 4
      %s171 = int_to_ptr.hbm [resolvable:$true] %s170
      %s172 = sshll.u32 [#allocation19], 4
      %s173 = int_to_ptr.vmem [resolvable:$true] %s172
      %178 = dma.hbm_to_vmem [thread:$0]  %s171, 2048, %s173, [#allocation18], 128, 128, 8
    $region69: #{tpu_custom_call.1} parent=1 // pred_fallthru
      _
    // Predicated region
    $region70: #{tpu_custom_call.1} parent=1 // pred_check
      _
    $region71: #{tpu_custom_call.1} parent=1 // pred_check_branch
      %180 = sbr.rel (0) target = $region73
    $region72: #{tpu_custom_call.1} parent=1 // pred_region
      _
    $region73: #{tpu_custom_call.1} parent=1 // pred_fallthru
      _
    // Predicated region
    $region74: #{tpu_custom_call.1} parent=1 // pred_check
      _
    $region75: #{tpu_custom_call.1} parent=1 // pred_check_branch
      %182 = sbr.rel (0) target = $region77
    $region76: #{tpu_custom_call.1} parent=1 // pred_region
      %184 = dma.done [#allocation3], 256
    $region77: #{tpu_custom_call.1} parent=1 // pred_fallthru
      _
    // Predicated region
    $region78: #{tpu_custom_call.1} parent=1 // pred_check
      _
    $region79: #{tpu_custom_call.1} parent=1 // pred_check_branch
      %186 = sbr.rel (0) target = $region81
    $region80: #{tpu_custom_call.1} parent=1 // pred_region
      %188 = dma.done [#allocation6], 64
    $region81: #{tpu_custom_call.1} parent=1 // pred_fallthru
      _
    // Predicated region
    $region82: #{tpu_custom_call.1} parent=1 // pred_check
      _
    $region83: #{tpu_custom_call.1} parent=1 // pred_check_branch
      %190 = sbr.rel (0) target = $region85
    $region84: #{tpu_custom_call.1} parent=1 // pred_region
      %192 = dma.done [#allocation6], 64
    $region85: #{tpu_custom_call.1} parent=1 // pred_fallthru
      _
    // Predicated region
    $region86: #{tpu_custom_call.1} parent=1 // pred_check
      _
    $region87: #{tpu_custom_call.1} parent=1 // pred_check_branch
      %194 = sbr.rel (0) target = $region89
    $region88: #{tpu_custom_call.1} parent=1 // pred_region
      %196 = dma.done [#allocation9], 64
    $region89: #{tpu_custom_call.1} parent=1 // pred_fallthru
      _
    // Predicated region
    $region90: #{tpu_custom_call.1} parent=1 // pred_check
      _
    $region91: #{tpu_custom_call.1} parent=1 // pred_check_branch
      %198 = sbr.rel (0) target = $region93
    $region92: #{tpu_custom_call.1} parent=1 // pred_region
      %200 = dma.done [#allocation9], 1024
    $region93: #{tpu_custom_call.1} parent=1 // pred_fallthru
      _
    // Predicated region
    $region94: #{tpu_custom_call.1} parent=1 // pred_check
      _
    $region95: #{tpu_custom_call.1} parent=1 // pred_check_branch
      %202 = sbr.rel (0) target = $region97
    $region96: #{tpu_custom_call.1} parent=1 // pred_region
      %204 = dma.done [#allocation12], 768
    $region97: #{tpu_custom_call.1} parent=1 // pred_fallthru
      _
    // Predicated region
    $region98: #{tpu_custom_call.1} parent=1 // pred_check
      _
    $region99: #{tpu_custom_call.1} parent=1 // pred_check_branch
      %206 = sbr.rel (0) target = $region101
    $region100: #{tpu_custom_call.1} parent=1 // pred_region
      %208 = dma.done [#allocation12], 512
    $region101: #{tpu_custom_call.1} parent=1 // pred_fallthru
      _
    // Predicated region
    $region102: #{tpu_custom_call.1} parent=1 // pred_check
      _
    $region103: #{tpu_custom_call.1} parent=1 // pred_check_branch
      %210 = sbr.rel (0) target = $region105
    $region104: #{tpu_custom_call.1} parent=1 // pred_region
      %212 = dma.done [#allocation15], 6144
    $region105: #{tpu_custom_call.1} parent=1 // pred_fallthru
      _
    // Predicated region
    $region106: #{tpu_custom_call.1} parent=1 // pred_check
      _
    $region107: #{tpu_custom_call.1} parent=1 // pred_check_branch
      %214 = sbr.rel (0) target = $region109
    $region108: #{tpu_custom_call.1} parent=1 // pred_region
      %216 = dma.done [#allocation15], 2048
    $region109: #{tpu_custom_call.1} parent=1 // pred_fallthru
      _
    // Predicated region
    $region110: #{tpu_custom_call.1} parent=1 // pred_check
      _
    $region111: #{tpu_custom_call.1} parent=1 // pred_check_branch
      %218 = sbr.rel (0) target = $region113
    $region112: #{tpu_custom_call.1} parent=1 // pred_region
      %220 = dma.done [#allocation18], 2048
    $region113: #{tpu_custom_call.1} parent=1 // pred_fallthru
      _
    // Predicated region
    $region114: #{tpu_custom_call.1} parent=1 // pred_check
      _
    $region115: #{tpu_custom_call.1} parent=1 // pred_check_branch
      %222 = sbr.rel (0) target = $region117
    $region116: #{tpu_custom_call.1} parent=1 // pred_region
      %224 = dma.done [#allocation18], 2048
    $region117: #{tpu_custom_call.1} parent=1 // pred_fallthru
      _
    %v225 = vld [vmem:[#allocation5] sm:$0xf]
    %v226 = vld [vmem:[#allocation10] sm:$0xff]
    %v227 = vld [vmem:[#allocation10 + $0x8] sm:$0xff]
    %v228 = vld [vmem:[#allocation10 + $0x10] sm:$0xff]
    %v229 = vld [vmem:[#allocation10 + $0x18] sm:$0xff]
    %v230 = vld [vmem:[#allocation10 + $0x20] sm:$0xff]
    %v231 = vld [vmem:[#allocation10 + $0x28] sm:$0xff]
    %v232 = vld [vmem:[#allocation10 + $0x30] sm:$0xff]
    %v233 = vld [vmem:[#allocation10 + $0x38] sm:$0xff]
    %v234 = vld [vmem:[%s7] sm:$0x1]
    %v236 = vperm.slane %v234, 0
    %vm238 = vcmask 523264
    %v240 = vsel %vm238, %v225, 0
    %242 = vmatpush.msra.mxu0 0.0
    %243 = vmatpush.msra.mxu0 0.0
    %244 = vmatpush.msra.mxu0 0.0
    %245 = vmatpush.msra.mxu0 0.0
    %246 = vmatpush.msra.mxu0 0.0
    %247 = vmatpush.msra.mxu0 0.0
    %248 = vmatpush.msra.mxu0 0.0
    %249 = vmatpush.msra.mxu0 0.0
    %250 = vmatpush.msra.mxu0 %v233
    %251 = vmatpush.msra.mxu0 %v232
    %252 = vmatpush.msra.mxu0 %v231
    %253 = vmatpush.msra.mxu0 %v230
    %254 = vmatpush.msra.mxu0 %v229
    %255 = vmatpush.msra.mxu0 %v228
    %256 = vmatpush.msra.mxu0 %v227
    %257 = vmatpush.msra.mxu0 %v226
    %258 = vmatmul.f32.gmra.mxu0 %v240
    %v259 = vpop.f32.mrf.mxu0
    %v260 = vadd.f32 %v236, %v259
    %261 = vdwg.mxu0
    %v262 = vmax.f32 %v260, 0.0
    %v263 = vmul.f32 %v262, 0.5
    %v264 = vld [vmem:[#allocation7] sm:$0xf]
    %v265 = vld [vmem:[#allocation11] sm:$0xff]
    %v266 = vld [vmem:[#allocation11 + $0x8] sm:$0xff]
    %v267 = vld [vmem:[#allocation11 + $0x10] sm:$0xff]
    %v268 = vld [vmem:[#allocation11 + $0x18] sm:$0xff]
    %v269 = vld [vmem:[#allocation11 + $0x20] sm:$0xff]
    %v270 = vld [vmem:[#allocation11 + $0x28] sm:$0xff]
    %v271 = vld [vmem:[%s8] sm:$0x1]
    %v273 = vperm.slane %v271, 0
    %vm275 = vcmask 392192
    %v277 = vsel %vm275, %v264, 0
    %279 = vmatpush.msra.mxu0 0.0
    %280 = vmatpush.msra.mxu0 0.0
    %281 = vmatpush.msra.mxu0 0.0
    %282 = vmatpush.msra.mxu0 0.0
    %283 = vmatpush.msra.mxu0 0.0
    %284 = vmatpush.msra.mxu0 0.0
    %285 = vmatpush.msra.mxu0 0.0
    %286 = vmatpush.msra.mxu0 0.0
    %287 = vmatpush.msra.mxu0 0.0
    %288 = vmatpush.msra.mxu0 0.0
    %289 = vmatpush.msra.mxu0 %v270
    %290 = vmatpush.msra.mxu0 %v269
    %291 = vmatpush.msra.mxu0 %v268
    %292 = vmatpush.msra.mxu0 %v267
    %293 = vmatpush.msra.mxu0 %v266
    %294 = vmatpush.msra.mxu0 %v265
    %295 = vmatmul.f32.gmra.mxu0 %v277
    %v296 = vpop.f32.mrf.mxu0
    %v297 = vadd.f32 %v273, %v296
    %298 = vdwg.mxu0
    %v299 = vmax.f32 %v297, 0.0
    %v300 = vld [vmem:[#allocation8] sm:$0xf]
    %v301 = vld [vmem:[#allocation13] sm:$0xff]
    %v302 = vld [vmem:[#allocation13 + $0x8] sm:$0xff]
    %v303 = vld [vmem:[#allocation13 + $0x10] sm:$0xff]
    %v304 = vld [vmem:[#allocation13 + $0x18] sm:$0xff]
    %v305 = vld [vmem:[%s9] sm:$0x1]
    %v307 = vperm.slane %v305, 0
    %vm309 = vcmask 261120
    %v311 = vsel %vm309, %v300, 0
    %313 = vmatpush.msra.mxu0 0.0
    %314 = vmatpush.msra.mxu0 0.0
    %315 = vmatpush.msra.mxu0 0.0
    %316 = vmatpush.msra.mxu0 0.0
    %317 = vmatpush.msra.mxu0 0.0
    %318 = vmatpush.msra.mxu0 0.0
    %319 = vmatpush.msra.mxu0 0.0
    %320 = vmatpush.msra.mxu0 0.0
    %321 = vmatpush.msra.mxu0 0.0
    %322 = vmatpush.msra.mxu0 0.0
    %323 = vmatpush.msra.mxu0 0.0
    %324 = vmatpush.msra.mxu0 0.0
    %325 = vmatpush.msra.mxu0 %v304
    %326 = vmatpush.msra.mxu0 %v303
    %327 = vmatpush.msra.mxu0 %v302
    %328 = vmatpush.msra.mxu0 %v301
    %329 = vmatmul.f32.gmra.mxu0 %v311
    %v330 = vpop.f32.mrf.mxu0
    %v331 = vadd.f32 %v307, %v330
    %332 = vdwg.mxu0
    %v333 = vmax.f32 %v331, 0.0
    %v334 = vmul.f32 %v333, 2.0
    %v336 = vrot.slane %v299, 4
    %vm338 = vcmask 1043456
    %v339 = vsel %vm338, %v263, %v336
    %v340 = vld [vmem:[#allocation14] sm:$0xff]
    %v341 = vld [vmem:[#allocation14 + $0x8] sm:$0xff]
    %v342 = vld [vmem:[#allocation14 + $0x10] sm:$0xff]
    %v343 = vld [vmem:[#allocation14 + $0x18] sm:$0xff]
    %v344 = vld [vmem:[#allocation14 + $0x20] sm:$0xff]
    %v345 = vld [vmem:[#allocation14 + $0x28] sm:$0xff]
    %v346 = vld [vmem:[#allocation14 + $0x30] sm:$0xff]
    %v347 = vld [vmem:[#allocation14 + $0x38] sm:$0xff]
    %v348 = vld [vmem:[#allocation14 + $0x40] sm:$0xff]
    %v349 = vld [vmem:[#allocation14 + $0x48] sm:$0xff]
    %v350 = vld [vmem:[#allocation14 + $0x50] sm:$0xff]
    %v351 = vld [vmem:[#allocation14 + $0x58] sm:$0xff]
    %v352 = vld [vmem:[#allocation14 + $0x60] sm:$0xff]
    %v353 = vld [vmem:[#allocation14 + $0x68] sm:$0xff]
    %v354 = vld [vmem:[#allocation14 + $0x70] sm:$0xff]
    %v355 = vld [vmem:[#allocation14 + $0x78] sm:$0xff]
    %v356 = vld [vmem:[#allocation14 + $0x80] sm:$0xff]
    %v357 = vld [vmem:[#allocation14 + $0x88] sm:$0xff]
    %v358 = vld [vmem:[#allocation14 + $0x90] sm:$0xff]
    %v359 = vld [vmem:[#allocation14 + $0x98] sm:$0xff]
    %v360 = vld [vmem:[#allocation14 + $0xa0] sm:$0xff]
    %v361 = vld [vmem:[#allocation14 + $0xa8] sm:$0xff]
    %v362 = vld [vmem:[#allocation14 + $0xb0] sm:$0xff]
    %v363 = vld [vmem:[#allocation14 + $0xb8] sm:$0xff]
    %v364 = vld [vmem:[#allocation14 + $0xc0] sm:$0xff]
    %v365 = vld [vmem:[#allocation14 + $0xc8] sm:$0xff]
    %v366 = vld [vmem:[#allocation14 + $0xd0] sm:$0xff]
    %v367 = vld [vmem:[#allocation14 + $0xd8] sm:$0xff]
    %v368 = vld [vmem:[#allocation14 + $0xe0] sm:$0xff]
    %v369 = vld [vmem:[#allocation14 + $0xe8] sm:$0xff]
    %v370 = vld [vmem:[#allocation14 + $0xf0] sm:$0xff]
    %v371 = vld [vmem:[#allocation14 + $0xf8] sm:$0xff]
    %v372 = vld [vmem:[#allocation14 + $0x100] sm:$0xff]
    %v373 = vld [vmem:[#allocation14 + $0x108] sm:$0xff]
    %v374 = vld [vmem:[#allocation14 + $0x110] sm:$0xff]
    %v375 = vld [vmem:[#allocation14 + $0x118] sm:$0xff]
    %v376 = vld [vmem:[#allocation14 + $0x120] sm:$0xff]
    %v377 = vld [vmem:[#allocation14 + $0x128] sm:$0xff]
    %v378 = vld [vmem:[#allocation14 + $0x130] sm:$0xff]
    %v379 = vld [vmem:[#allocation14 + $0x138] sm:$0xff]
    %v380 = vld [vmem:[#allocation14 + $0x140] sm:$0xff]
    %v381 = vld [vmem:[#allocation14 + $0x148] sm:$0xff]
    %v382 = vld [vmem:[#allocation14 + $0x150] sm:$0xff]
    %v383 = vld [vmem:[#allocation14 + $0x158] sm:$0xff]
    %v384 = vld [vmem:[#allocation14 + $0x160] sm:$0xff]
    %v385 = vld [vmem:[#allocation14 + $0x168] sm:$0xff]
    %v386 = vld [vmem:[#allocation14 + $0x170] sm:$0xff]
    %v387 = vld [vmem:[#allocation14 + $0x178] sm:$0xff]
    %v388 = vld [vmem:[%s11] sm:$0x7]
    %v390 = vperm.slane %v388, 0
    %v391 = vperm.slane %v388, 1
    %v392 = vperm.slane %v388, 2
    %396 = vmatpush.msra.mxu0 %v385
    %397 = vmatpush.msra.mxu0 %v382
    %398 = vmatpush.msra.mxu0 %v379
    %399 = vmatpush.msra.mxu0 %v376
    %400 = vmatpush.msra.mxu0 %v373
    %401 = vmatpush.msra.mxu0 %v370
    %402 = vmatpush.msra.mxu0 %v367
    %403 = vmatpush.msra.mxu0 %v364
    %404 = vmatpush.msra.mxu0 %v361
    %405 = vmatpush.msra.mxu0 %v358
    %406 = vmatpush.msra.mxu0 %v355
    %407 = vmatpush.msra.mxu0 %v352
    %408 = vmatpush.msra.mxu0 %v349
    %409 = vmatpush.msra.mxu0 %v346
    %410 = vmatpush.msra.mxu0 %v343
    %411 = vmatpush.msra.mxu0 %v340
    %412 = vmatmul.f32.gmra.mxu0 %v339
    %v413 = vpop.f32.mrf.mxu0
    %v414 = vadd.f32 %v390, %v413
    %415 = vmatmul.f32.gmra.mxu0 %v334
    %v416 = vpop.f32.mrf.mxu0
    %v417 = vadd.f32 %v390, %v416
    %418 = vdwg.mxu0
    %419 = vmatpush.msra.mxu0 %v386
    %420 = vmatpush.msra.mxu0 %v383
    %421 = vmatpush.msra.mxu0 %v380
    %422 = vmatpush.msra.mxu0 %v377
    %423 = vmatpush.msra.mxu0 %v374
    %424 = vmatpush.msra.mxu0 %v371
    %425 = vmatpush.msra.mxu0 %v368
    %426 = vmatpush.msra.mxu0 %v365
    %427 = vmatpush.msra.mxu0 %v362
    %428 = vmatpush.msra.mxu0 %v359
    %429 = vmatpush.msra.mxu0 %v356
    %430 = vmatpush.msra.mxu0 %v353
    %431 = vmatpush.msra.mxu0 %v350
    %432 = vmatpush.msra.mxu0 %v347
    %433 = vmatpush.msra.mxu0 %v344
    %434 = vmatpush.msra.mxu0 %v341
    %435 = vmatmul.f32.gmra.mxu0 %v339
    %v436 = vpop.f32.mrf.mxu0
    %v437 = vadd.f32 %v391, %v436
    %438 = vmatmul.f32.gmra.mxu0 %v334
    %v439 = vpop.f32.mrf.mxu0
    %v440 = vadd.f32 %v391, %v439
    %441 = vdwg.mxu0
    %442 = vmatpush.msra.mxu0 %v387
    %443 = vmatpush.msra.mxu0 %v384
    %444 = vmatpush.msra.mxu0 %v381
    %445 = vmatpush.msra.mxu0 %v378
    %446 = vmatpush.msra.mxu0 %v375
    %447 = vmatpush.msra.mxu0 %v372
    %448 = vmatpush.msra.mxu0 %v369
    %449 = vmatpush.msra.mxu0 %v366
    %450 = vmatpush.msra.mxu0 %v363
    %451 = vmatpush.msra.mxu0 %v360
    %452 = vmatpush.msra.mxu0 %v357
    %453 = vmatpush.msra.mxu0 %v354
    %454 = vmatpush.msra.mxu0 %v351
    %455 = vmatpush.msra.mxu0 %v348
    %456 = vmatpush.msra.mxu0 %v345
    %457 = vmatpush.msra.mxu0 %v342
    %458 = vmatmul.f32.gmra.mxu0 %v339
    %v459 = vpop.f32.mrf.mxu0
    %v460 = vadd.f32 %v392, %v459
    %461 = vmatmul.f32.gmra.mxu0 %v334
    %v462 = vpop.f32.mrf.mxu0
    %v463 = vadd.f32 %v392, %v462
    %464 = vdwg.mxu0
    %v465 = vld [vmem:[#allocation2] sm:$0xff]
    %v466 = vld [vmem:[#allocation2 + $0x8] sm:$0xf]
    %vm467 = vcmask 130048
    %v469 = vsel %vm467, %v414, 0
    %v472 = vsel %vm467, %v417, 0
    %v475 = vsel %vm467, %v437, 0
    %v478 = vsel %vm467, %v440, 0
    %480 = vmatpush.xpose.msra.mxu0 0.0
    %481 = vmatpush.xpose.msra.mxu0 0.0
    %482 = vmatpush.xpose.msra.mxu0 0.0
    %483 = vmatpush.xpose.msra.mxu0 0.0
    %484 = vmatpush.xpose.msra.mxu0 0.0
    %485 = vmatpush.xpose.msra.mxu0 0.0
    %486 = vmatpush.xpose.msra.mxu0 0.0
    %487 = vmatpush.xpose.msra.mxu0 0.0
    %488 = vmatpush.xpose.msra.mxu0 0.0
    %489 = vmatpush.xpose.msra.mxu0 0.0
    %490 = vmatpush.xpose.msra.mxu0 0.0
    %491 = vmatpush.xpose.msra.mxu0 0.0
    %492 = vmatpush.xpose.msra.mxu0 0.0
    %493 = vmatpush.xpose.msra.mxu0 0.0
    %494 = vmatpush.xpose.msra.mxu0 %v478
    %495 = vmatpush.xpose.msra.mxu0 %v475
    %496 = vmatmul.f32.gmra.mxu0 %v469
    %v497 = vpop.f32.mrf.mxu0
    %v498 = vadd.f32 0.0, %v497
    %499 = vmatmul.f32.gmra.mxu0 %v472
    %v500 = vpop.f32.mrf.mxu0
    %v501 = vadd.f32 0.0, %v500
    %502 = vdwg.mxu0
    %v503 = vmul.f32 %v498, 0.25
    %v504 = vmul.f32 %v501, 0.25
    %v505 = vadd.f32 %v503, %v465
    %v506 = vadd.f32 %v504, %v466
    %vm507 = vcmask 97280
    %v508 = vsel %vm507, %v505, -inf
    %509 = vmax.xlane.f32.xlu0 %v508
    %v510 = vpop.xlane.xlu0 %509
    %vm511 = vcmask 93184
    %v512 = vsel %vm511, %v506, -inf
    %513 = vmax.xlane.f32.xlu0 %v512
    %v514 = vpop.xlane.xlu0 %513
    %v515 = vsub.f32 %v505, %v510
    %v516 = vsub.f32 %v506, %v514
    %v517 = vmul.f32 %v515, 1.442695
    %v518 = vpow.pop %v517
    %v519 = vmul.f32 %v516, 1.442695
    %v520 = vpow.pop %v519
    %v521 = vsel %vm507, %v518, 0.0
    %522 = vadd.xlane.f32.xlu0 %v521
    %v523 = vpop.xlane.xlu0 %522
    %v524 = vsel %vm511, %v520, 0.0
    %525 = vadd.xlane.f32.xlu0 %v524
    %v526 = vpop.xlane.xlu0 %525
    %v527 = vrcp.pop %v523
    %v528 = vrcp.pop %v526
    %v529 = vmul.f32 %v518, %v527
    %v530 = vmul.f32 %v520, %v528
    %v532 = vsel %vm507, %v529, 0
    %v535 = vsel %vm507, %v530, 0
    %v538 = vsel %vm338, %v463, 0
    %540 = vmatpush.msra.mxu0 0.0
    %541 = vmatpush.msra.mxu0 0.0
    %542 = vmatpush.msra.mxu0 0.0
    %543 = vmatpush.msra.mxu0 0.0
    %544 = vmatpush.msra.mxu0 0.0
    %545 = vmatpush.msra.mxu0 0.0
    %546 = vmatpush.msra.mxu0 0.0
    %547 = vmatpush.msra.mxu0 0.0
    %548 = vmatpush.msra.mxu0 0.0
    %549 = vmatpush.msra.mxu0 0.0
    %550 = vmatpush.msra.mxu0 0.0
    %551 = vmatpush.msra.mxu0 0.0
    %552 = vmatpush.msra.mxu0 0.0
    %553 = vmatpush.msra.mxu0 0.0
    %554 = vmatpush.msra.mxu0 %v538
    %555 = vmatpush.msra.mxu0 %v460
    %556 = vmatmul.f32.gmra.mxu0 %v532
    %v557 = vpop.f32.mrf.mxu0
    %v558 = vadd.f32 0.0, %v557
    %559 = vmatmul.f32.gmra.mxu0 %v535
    %v560 = vpop.f32.mrf.mxu0
    %v561 = vadd.f32 0.0, %v560
    %562 = vdwg.mxu0
    %563 = vrot.lane.b32.xlu0 %v414, 112
    %v564 = vpop.permute.xlu0 %563
    %565 = vrot.lane.b32.xlu0 %v417, 112
    %v566 = vpop.permute.xlu0 %565
    %567 = vrot.lane.b32.xlu0 %v437, 112
    %v568 = vpop.permute.xlu0 %567
    %569 = vrot.lane.b32.xlu0 %v440, 112
    %v570 = vpop.permute.xlu0 %569
    %v571 = vsel %vm467, %v564, 0
    %v573 = vsel %vm467, %v566, 0
    %v575 = vsel %vm467, %v568, 0
    %v577 = vsel %vm467, %v570, 0
    %579 = vmatpush.xpose.msra.mxu0 0.0
    %580 = vmatpush.xpose.msra.mxu0 0.0
    %581 = vmatpush.xpose.msra.mxu0 0.0
    %582 = vmatpush.xpose.msra.mxu0 0.0
    %583 = vmatpush.xpose.msra.mxu0 0.0
    %584 = vmatpush.xpose.msra.mxu0 0.0
    %585 = vmatpush.xpose.msra.mxu0 0.0
    %586 = vmatpush.xpose.msra.mxu0 0.0
    %587 = vmatpush.xpose.msra.mxu0 0.0
    %588 = vmatpush.xpose.msra.mxu0 0.0
    %589 = vmatpush.xpose.msra.mxu0 0.0
    %590 = vmatpush.xpose.msra.mxu0 0.0
    %591 = vmatpush.xpose.msra.mxu0 0.0
    %592 = vmatpush.xpose.msra.mxu0 0.0
    %593 = vmatpush.xpose.msra.mxu0 %v577
    %594 = vmatpush.xpose.msra.mxu0 %v575
    %595 = vmatmul.f32.gmra.mxu0 %v571
    %v596 = vpop.f32.mrf.mxu0
    %v597 = vadd.f32 0.0, %v596
    %598 = vmatmul.f32.gmra.mxu0 %v573
    %v599 = vpop.f32.mrf.mxu0
    %v600 = vadd.f32 0.0, %v599
    %601 = vdwg.mxu0
    %v602 = vmul.f32 %v597, 0.25
    %v603 = vmul.f32 %v600, 0.25
    %v604 = vadd.f32 %v602, %v465
    %v605 = vadd.f32 %v603, %v466
    %v606 = vsel %vm507, %v604, -inf
    %607 = vmax.xlane.f32.xlu0 %v606
    %v608 = vpop.xlane.xlu0 %607
    %v609 = vsel %vm511, %v605, -inf
    %610 = vmax.xlane.f32.xlu0 %v609
    %v611 = vpop.xlane.xlu0 %610
    %v612 = vsub.f32 %v604, %v608
    %v613 = vsub.f32 %v605, %v611
    %v614 = vmul.f32 %v612, 1.442695
    %v615 = vpow.pop %v614
    %v616 = vmul.f32 %v613, 1.442695
    %v617 = vpow.pop %v616
    %v618 = vsel %vm507, %v615, 0.0
    %619 = vadd.xlane.f32.xlu0 %v618
    %v620 = vpop.xlane.xlu0 %619
    %v621 = vsel %vm511, %v617, 0.0
    %622 = vadd.xlane.f32.xlu0 %v621
    %v623 = vpop.xlane.xlu0 %622
    %v624 = vrcp.pop %v620
    %v625 = vrcp.pop %v623
    %v626 = vmul.f32 %v615, %v624
    %v627 = vmul.f32 %v617, %v625
    %629 = vrot.lane.b32.xlu0 %v460, 112
    %v630 = vpop.permute.xlu0 %629
    %631 = vrot.lane.b32.xlu0 %v463, 112
    %v632 = vpop.permute.xlu0 %631
    %v635 = vsel %vm507, %v626, 0
    %v638 = vsel %vm507, %v627, 0
    %v640 = vsel %vm338, %v632, 0
    %642 = vmatpush.msra.mxu0 0.0
    %643 = vmatpush.msra.mxu0 0.0
    %644 = vmatpush.msra.mxu0 0.0
    %645 = vmatpush.msra.mxu0 0.0
    %646 = vmatpush.msra.mxu0 0.0
    %647 = vmatpush.msra.mxu0 0.0
    %648 = vmatpush.msra.mxu0 0.0
    %649 = vmatpush.msra.mxu0 0.0
    %650 = vmatpush.msra.mxu0 0.0
    %651 = vmatpush.msra.mxu0 0.0
    %652 = vmatpush.msra.mxu0 0.0
    %653 = vmatpush.msra.mxu0 0.0
    %654 = vmatpush.msra.mxu0 0.0
    %655 = vmatpush.msra.mxu0 0.0
    %656 = vmatpush.msra.mxu0 %v640
    %657 = vmatpush.msra.mxu0 %v630
    %658 = vmatmul.f32.gmra.mxu0 %v635
    %v659 = vpop.f32.mrf.mxu0
    %v660 = vadd.f32 0.0, %v659
    %661 = vmatmul.f32.gmra.mxu0 %v638
    %v662 = vpop.f32.mrf.mxu0
    %v663 = vadd.f32 0.0, %v662
    %664 = vdwg.mxu0
    %665 = vrot.lane.b32.xlu0 %v414, 96
    %v666 = vpop.permute.xlu0 %665
    %667 = vrot.lane.b32.xlu0 %v417, 96
    %v668 = vpop.permute.xlu0 %667
    %669 = vrot.lane.b32.xlu0 %v437, 96
    %v670 = vpop.permute.xlu0 %669
    %671 = vrot.lane.b32.xlu0 %v440, 96
    %v672 = vpop.permute.xlu0 %671
    %v673 = vsel %vm467, %v666, 0
    %v675 = vsel %vm467, %v668, 0
    %v677 = vsel %vm467, %v670, 0
    %v679 = vsel %vm467, %v672, 0
    %681 = vmatpush.xpose.msra.mxu0 0.0
    %682 = vmatpush.xpose.msra.mxu0 0.0
    %683 = vmatpush.xpose.msra.mxu0 0.0
    %684 = vmatpush.xpose.msra.mxu0 0.0
    %685 = vmatpush.xpose.msra.mxu0 0.0
    %686 = vmatpush.xpose.msra.mxu0 0.0
    %687 = vmatpush.xpose.msra.mxu0 0.0
    %688 = vmatpush.xpose.msra.mxu0 0.0
    %689 = vmatpush.xpose.msra.mxu0 0.0
    %690 = vmatpush.xpose.msra.mxu0 0.0
    %691 = vmatpush.xpose.msra.mxu0 0.0
    %692 = vmatpush.xpose.msra.mxu0 0.0
    %693 = vmatpush.xpose.msra.mxu0 0.0
    %694 = vmatpush.xpose.msra.mxu0 0.0
    %695 = vmatpush.xpose.msra.mxu0 %v679
    %696 = vmatpush.xpose.msra.mxu0 %v677
    %697 = vmatmul.f32.gmra.mxu0 %v673
    %v698 = vpop.f32.mrf.mxu0
    %v699 = vadd.f32 0.0, %v698
    %700 = vmatmul.f32.gmra.mxu0 %v675
    %v701 = vpop.f32.mrf.mxu0
    %v702 = vadd.f32 0.0, %v701
    %703 = vdwg.mxu0
    %v704 = vmul.f32 %v699, 0.25
    %v705 = vmul.f32 %v702, 0.25
    %v706 = vadd.f32 %v704, %v465
    %v707 = vadd.f32 %v705, %v466
    %v708 = vsel %vm507, %v706, -inf
    %709 = vmax.xlane.f32.xlu0 %v708
    %v710 = vpop.xlane.xlu0 %709
    %v711 = vsel %vm511, %v707, -inf
    %712 = vmax.xlane.f32.xlu0 %v711
    %v713 = vpop.xlane.xlu0 %712
    %v714 = vsub.f32 %v706, %v710
    %v715 = vsub.f32 %v707, %v713
    %v716 = vmul.f32 %v714, 1.442695
    %v717 = vpow.pop %v716
    %v718 = vmul.f32 %v715, 1.442695
    %v719 = vpow.pop %v718
    %v720 = vsel %vm507, %v717, 0.0
    %721 = vadd.xlane.f32.xlu0 %v720
    %v722 = vpop.xlane.xlu0 %721
    %v723 = vsel %vm511, %v719, 0.0
    %724 = vadd.xlane.f32.xlu0 %v723
    %v725 = vpop.xlane.xlu0 %724
    %v726 = vrcp.pop %v722
    %v727 = vrcp.pop %v725
    %v728 = vmul.f32 %v717, %v726
    %v729 = vmul.f32 %v719, %v727
    %730 = vrot.lane.b32.xlu0 %v460, 96
    %v731 = vpop.permute.xlu0 %730
    %732 = vrot.lane.b32.xlu0 %v463, 96
    %v733 = vpop.permute.xlu0 %732
    %v736 = vsel %vm507, %v728, 0
    %v739 = vsel %vm507, %v729, 0
    %v741 = vsel %vm338, %v733, 0
    %743 = vmatpush.msra.mxu0 0.0
    %744 = vmatpush.msra.mxu0 0.0
    %745 = vmatpush.msra.mxu0 0.0
    %746 = vmatpush.msra.mxu0 0.0
    %747 = vmatpush.msra.mxu0 0.0
    %748 = vmatpush.msra.mxu0 0.0
    %749 = vmatpush.msra.mxu0 0.0
    %750 = vmatpush.msra.mxu0 0.0
    %751 = vmatpush.msra.mxu0 0.0
    %752 = vmatpush.msra.mxu0 0.0
    %753 = vmatpush.msra.mxu0 0.0
    %754 = vmatpush.msra.mxu0 0.0
    %755 = vmatpush.msra.mxu0 0.0
    %756 = vmatpush.msra.mxu0 0.0
    %757 = vmatpush.msra.mxu0 %v741
    %758 = vmatpush.msra.mxu0 %v731
    %759 = vmatmul.f32.gmra.mxu0 %v736
    %v760 = vpop.f32.mrf.mxu0
    %v761 = vadd.f32 0.0, %v760
    %762 = vmatmul.f32.gmra.mxu0 %v739
    %v763 = vpop.f32.mrf.mxu0
    %v764 = vadd.f32 0.0, %v763
    %765 = vdwg.mxu0
    %766 = vrot.lane.b32.xlu0 %v414, 80
    %v767 = vpop.permute.xlu0 %766
    %768 = vrot.lane.b32.xlu0 %v417, 80
    %v769 = vpop.permute.xlu0 %768
    %770 = vrot.lane.b32.xlu0 %v437, 80
    %v771 = vpop.permute.xlu0 %770
    %772 = vrot.lane.b32.xlu0 %v440, 80
    %v773 = vpop.permute.xlu0 %772
    %v774 = vsel %vm467, %v767, 0
    %v776 = vsel %vm467, %v769, 0
    %v778 = vsel %vm467, %v771, 0
    %v780 = vsel %vm467, %v773, 0
    %782 = vmatpush.xpose.msra.mxu0 0.0
    %783 = vmatpush.xpose.msra.mxu0 0.0
    %784 = vmatpush.xpose.msra.mxu0 0.0
    %785 = vmatpush.xpose.msra.mxu0 0.0
    %786 = vmatpush.xpose.msra.mxu0 0.0
    %787 = vmatpush.xpose.msra.mxu0 0.0
    %788 = vmatpush.xpose.msra.mxu0 0.0
    %789 = vmatpush.xpose.msra.mxu0 0.0
    %790 = vmatpush.xpose.msra.mxu0 0.0
    %791 = vmatpush.xpose.msra.mxu0 0.0
    %792 = vmatpush.xpose.msra.mxu0 0.0
    %793 = vmatpush.xpose.msra.mxu0 0.0
    %794 = vmatpush.xpose.msra.mxu0 0.0
    %795 = vmatpush.xpose.msra.mxu0 0.0
    %796 = vmatpush.xpose.msra.mxu0 %v780
    %797 = vmatpush.xpose.msra.mxu0 %v778
    %798 = vmatmul.f32.gmra.mxu0 %v774
    %v799 = vpop.f32.mrf.mxu0
    %v800 = vadd.f32 0.0, %v799
    %801 = vmatmul.f32.gmra.mxu0 %v776
    %v802 = vpop.f32.mrf.mxu0
    %v803 = vadd.f32 0.0, %v802
    %804 = vdwg.mxu0
    %v805 = vmul.f32 %v800, 0.25
    %v806 = vmul.f32 %v803, 0.25
    %v807 = vadd.f32 %v805, %v465
    %v808 = vadd.f32 %v806, %v466
    %v809 = vsel %vm507, %v807, -inf
    %810 = vmax.xlane.f32.xlu0 %v809
    %v811 = vpop.xlane.xlu0 %810
    %v812 = vsel %vm511, %v808, -inf
    %813 = vmax.xlane.f32.xlu0 %v812
    %v814 = vpop.xlane.xlu0 %813
    %v815 = vsub.f32 %v807, %v811
    %v816 = vsub.f32 %v808, %v814
    %v817 = vmul.f32 %v815, 1.442695
    %v818 = vpow.pop %v817
    %v819 = vmul.f32 %v816, 1.442695
    %v820 = vpow.pop %v819
    %v821 = vsel %vm507, %v818, 0.0
    %822 = vadd.xlane.f32.xlu0 %v821
    %v823 = vpop.xlane.xlu0 %822
    %v824 = vsel %vm511, %v820, 0.0
    %825 = vadd.xlane.f32.xlu0 %v824
    %v826 = vpop.xlane.xlu0 %825
    %v827 = vrcp.pop %v823
    %v828 = vrcp.pop %v826
    %v829 = vmul.f32 %v818, %v827
    %v830 = vmul.f32 %v820, %v828
    %831 = vrot.lane.b32.xlu0 %v460, 80
    %v832 = vpop.permute.xlu0 %831
    %833 = vrot.lane.b32.xlu0 %v463, 80
    %v834 = vpop.permute.xlu0 %833
    %v837 = vsel %vm507, %v829, 0
    %v840 = vsel %vm507, %v830, 0
    %v842 = vsel %vm338, %v834, 0
    %844 = vmatpush.msra.mxu0 0.0
    %845 = vmatpush.msra.mxu0 0.0
    %846 = vmatpush.msra.mxu0 0.0
    %847 = vmatpush.msra.mxu0 0.0
    %848 = vmatpush.msra.mxu0 0.0
    %849 = vmatpush.msra.mxu0 0.0
    %850 = vmatpush.msra.mxu0 0.0
    %851 = vmatpush.msra.mxu0 0.0
    %852 = vmatpush.msra.mxu0 0.0
    %853 = vmatpush.msra.mxu0 0.0
    %854 = vmatpush.msra.mxu0 0.0
    %855 = vmatpush.msra.mxu0 0.0
    %856 = vmatpush.msra.mxu0 0.0
    %857 = vmatpush.msra.mxu0 0.0
    %858 = vmatpush.msra.mxu0 %v842
    %859 = vmatpush.msra.mxu0 %v832
    %860 = vmatmul.f32.gmra.mxu0 %v837
    %v861 = vpop.f32.mrf.mxu0
    %v862 = vadd.f32 0.0, %v861
    %863 = vmatmul.f32.gmra.mxu0 %v840
    %v864 = vpop.f32.mrf.mxu0
    %v865 = vadd.f32 0.0, %v864
    %866 = vdwg.mxu0
    %867 = vrot.lane.b32.xlu0 %v414, 64
    %v868 = vpop.permute.xlu0 %867
    %869 = vrot.lane.b32.xlu0 %v417, 64
    %v870 = vpop.permute.xlu0 %869
    %871 = vrot.lane.b32.xlu0 %v437, 64
    %v872 = vpop.permute.xlu0 %871
    %873 = vrot.lane.b32.xlu0 %v440, 64
    %v874 = vpop.permute.xlu0 %873
    %v875 = vsel %vm467, %v868, 0
    %v877 = vsel %vm467, %v870, 0
    %v879 = vsel %vm467, %v872, 0
    %v881 = vsel %vm467, %v874, 0
    %883 = vmatpush.xpose.msra.mxu0 0.0
    %884 = vmatpush.xpose.msra.mxu0 0.0
    %885 = vmatpush.xpose.msra.mxu0 0.0
    %886 = vmatpush.xpose.msra.mxu0 0.0
    %887 = vmatpush.xpose.msra.mxu0 0.0
    %888 = vmatpush.xpose.msra.mxu0 0.0
    %889 = vmatpush.xpose.msra.mxu0 0.0
    %890 = vmatpush.xpose.msra.mxu0 0.0
    %891 = vmatpush.xpose.msra.mxu0 0.0
    %892 = vmatpush.xpose.msra.mxu0 0.0
    %893 = vmatpush.xpose.msra.mxu0 0.0
    %894 = vmatpush.xpose.msra.mxu0 0.0
    %895 = vmatpush.xpose.msra.mxu0 0.0
    %896 = vmatpush.xpose.msra.mxu0 0.0
    %897 = vmatpush.xpose.msra.mxu0 %v881
    %898 = vmatpush.xpose.msra.mxu0 %v879
    %899 = vmatmul.f32.gmra.mxu0 %v875
    %v900 = vpop.f32.mrf.mxu0
    %v901 = vadd.f32 0.0, %v900
    %902 = vmatmul.f32.gmra.mxu0 %v877
    %v903 = vpop.f32.mrf.mxu0
    %v904 = vadd.f32 0.0, %v903
    %905 = vdwg.mxu0
    %v906 = vmul.f32 %v901, 0.25
    %v907 = vmul.f32 %v904, 0.25
    %v908 = vadd.f32 %v906, %v465
    %v909 = vadd.f32 %v907, %v466
    %v910 = vsel %vm507, %v908, -inf
    %911 = vmax.xlane.f32.xlu0 %v910
    %v912 = vpop.xlane.xlu0 %911
    %v913 = vsel %vm511, %v909, -inf
    %914 = vmax.xlane.f32.xlu0 %v913
    %v915 = vpop.xlane.xlu0 %914
    %v916 = vsub.f32 %v908, %v912
    %v917 = vsub.f32 %v909, %v915
    %v918 = vmul.f32 %v916, 1.442695
    %v919 = vpow.pop %v918
    %v920 = vmul.f32 %v917, 1.442695
    %v921 = vpow.pop %v920
    %v922 = vsel %vm507, %v919, 0.0
    %923 = vadd.xlane.f32.xlu0 %v922
    %v924 = vpop.xlane.xlu0 %923
    %v925 = vsel %vm511, %v921, 0.0
    %926 = vadd.xlane.f32.xlu0 %v925
    %v927 = vpop.xlane.xlu0 %926
    %v928 = vrcp.pop %v924
    %v929 = vrcp.pop %v927
    %v930 = vmul.f32 %v919, %v928
    %v931 = vmul.f32 %v921, %v929
    %932 = vrot.lane.b32.xlu0 %v460, 64
    %v933 = vpop.permute.xlu0 %932
    %934 = vrot.lane.b32.xlu0 %v463, 64
    %v935 = vpop.permute.xlu0 %934
    %v938 = vsel %vm507, %v930, 0
    %v941 = vsel %vm507, %v931, 0
    %v943 = vsel %vm338, %v935, 0
    %945 = vmatpush.msra.mxu0 0.0
    %946 = vmatpush.msra.mxu0 0.0
    %947 = vmatpush.msra.mxu0 0.0
    %948 = vmatpush.msra.mxu0 0.0
    %949 = vmatpush.msra.mxu0 0.0
    %950 = vmatpush.msra.mxu0 0.0
    %951 = vmatpush.msra.mxu0 0.0
    %952 = vmatpush.msra.mxu0 0.0
    %953 = vmatpush.msra.mxu0 0.0
    %954 = vmatpush.msra.mxu0 0.0
    %955 = vmatpush.msra.mxu0 0.0
    %956 = vmatpush.msra.mxu0 0.0
    %957 = vmatpush.msra.mxu0 0.0
    %958 = vmatpush.msra.mxu0 0.0
    %959 = vmatpush.msra.mxu0 %v943
    %960 = vmatpush.msra.mxu0 %v933
    %961 = vmatmul.f32.gmra.mxu0 %v938
    %v962 = vpop.f32.mrf.mxu0
    %v963 = vadd.f32 0.0, %v962
    %964 = vmatmul.f32.gmra.mxu0 %v941
    %v965 = vpop.f32.mrf.mxu0
    %v966 = vadd.f32 0.0, %v965
    %967 = vdwg.mxu0
    %968 = vrot.lane.b32.xlu0 %v414, 48
    %v969 = vpop.permute.xlu0 %968
    %970 = vrot.lane.b32.xlu0 %v417, 48
    %v971 = vpop.permute.xlu0 %970
    %972 = vrot.lane.b32.xlu0 %v437, 48
    %v973 = vpop.permute.xlu0 %972
    %974 = vrot.lane.b32.xlu0 %v440, 48
    %v975 = vpop.permute.xlu0 %974
    %v976 = vsel %vm467, %v969, 0
    %v978 = vsel %vm467, %v971, 0
    %v980 = vsel %vm467, %v973, 0
    %v982 = vsel %vm467, %v975, 0
    %984 = vmatpush.xpose.msra.mxu0 0.0
    %985 = vmatpush.xpose.msra.mxu0 0.0
    %986 = vmatpush.xpose.msra.mxu0 0.0
    %987 = vmatpush.xpose.msra.mxu0 0.0
    %988 = vmatpush.xpose.msra.mxu0 0.0
    %989 = vmatpush.xpose.msra.mxu0 0.0
    %990 = vmatpush.xpose.msra.mxu0 0.0
    %991 = vmatpush.xpose.msra.mxu0 0.0
    %992 = vmatpush.xpose.msra.mxu0 0.0
    %993 = vmatpush.xpose.msra.mxu0 0.0
    %994 = vmatpush.xpose.msra.mxu0 0.0
    %995 = vmatpush.xpose.msra.mxu0 0.0
    %996 = vmatpush.xpose.msra.mxu0 0.0
    %997 = vmatpush.xpose.msra.mxu0 0.0
    %998 = vmatpush.xpose.msra.mxu0 %v982
    %999 = vmatpush.xpose.msra.mxu0 %v980
    %1000 = vmatmul.f32.gmra.mxu0 %v976
    %v1001 = vpop.f32.mrf.mxu0
    %v1002 = vadd.f32 0.0, %v1001
    %1003 = vmatmul.f32.gmra.mxu0 %v978
    %v1004 = vpop.f32.mrf.mxu0
    %v1005 = vadd.f32 0.0, %v1004
    %1006 = vdwg.mxu0
    %v1007 = vmul.f32 %v1002, 0.25
    %v1008 = vmul.f32 %v1005, 0.25
    %v1009 = vadd.f32 %v1007, %v465
    %v1010 = vadd.f32 %v1008, %v466
    %v1011 = vsel %vm507, %v1009, -inf
    %1012 = vmax.xlane.f32.xlu0 %v1011
    %v1013 = vpop.xlane.xlu0 %1012
    %v1014 = vsel %vm511, %v1010, -inf
    %1015 = vmax.xlane.f32.xlu0 %v1014
    %v1016 = vpop.xlane.xlu0 %1015
    %v1017 = vsub.f32 %v1009, %v1013
    %v1018 = vsub.f32 %v1010, %v1016
    %v1019 = vmul.f32 %v1017, 1.442695
    %v1020 = vpow.pop %v1019
    %v1021 = vmul.f32 %v1018, 1.442695
    %v1022 = vpow.pop %v1021
    %v1023 = vsel %vm507, %v1020, 0.0
    %1024 = vadd.xlane.f32.xlu0 %v1023
    %v1025 = vpop.xlane.xlu0 %1024
    %v1026 = vsel %vm511, %v1022, 0.0
    %1027 = vadd.xlane.f32.xlu0 %v1026
    %v1028 = vpop.xlane.xlu0 %1027
    %v1029 = vrcp.pop %v1025
    %v1030 = vrcp.pop %v1028
    %v1031 = vmul.f32 %v1020, %v1029
    %v1032 = vmul.f32 %v1022, %v1030
    %1033 = vrot.lane.b32.xlu0 %v460, 48
    %v1034 = vpop.permute.xlu0 %1033
    %1035 = vrot.lane.b32.xlu0 %v463, 48
    %v1036 = vpop.permute.xlu0 %1035
    %v1039 = vsel %vm507, %v1031, 0
    %v1042 = vsel %vm507, %v1032, 0
    %v1044 = vsel %vm338, %v1036, 0
    %1046 = vmatpush.msra.mxu0 0.0
    %1047 = vmatpush.msra.mxu0 0.0
    %1048 = vmatpush.msra.mxu0 0.0
    %1049 = vmatpush.msra.mxu0 0.0
    %1050 = vmatpush.msra.mxu0 0.0
    %1051 = vmatpush.msra.mxu0 0.0
    %1052 = vmatpush.msra.mxu0 0.0
    %1053 = vmatpush.msra.mxu0 0.0
    %1054 = vmatpush.msra.mxu0 0.0
    %1055 = vmatpush.msra.mxu0 0.0
    %1056 = vmatpush.msra.mxu0 0.0
    %1057 = vmatpush.msra.mxu0 0.0
    %1058 = vmatpush.msra.mxu0 0.0
    %1059 = vmatpush.msra.mxu0 0.0
    %1060 = vmatpush.msra.mxu0 %v1044
    %1061 = vmatpush.msra.mxu0 %v1034
    %1062 = vmatmul.f32.gmra.mxu0 %v1039
    %v1063 = vpop.f32.mrf.mxu0
    %v1064 = vadd.f32 0.0, %v1063
    %1065 = vmatmul.f32.gmra.mxu0 %v1042
    %v1066 = vpop.f32.mrf.mxu0
    %v1067 = vadd.f32 0.0, %v1066
    %1068 = vdwg.mxu0
    %1069 = vrot.lane.b32.xlu0 %v414, 32
    %v1070 = vpop.permute.xlu0 %1069
    %1071 = vrot.lane.b32.xlu0 %v417, 32
    %v1072 = vpop.permute.xlu0 %1071
    %1073 = vrot.lane.b32.xlu0 %v437, 32
    %v1074 = vpop.permute.xlu0 %1073
    %1075 = vrot.lane.b32.xlu0 %v440, 32
    %v1076 = vpop.permute.xlu0 %1075
    %v1077 = vsel %vm467, %v1070, 0
    %v1079 = vsel %vm467, %v1072, 0
    %v1081 = vsel %vm467, %v1074, 0
    %v1083 = vsel %vm467, %v1076, 0
    %1085 = vmatpush.xpose.msra.mxu0 0.0
    %1086 = vmatpush.xpose.msra.mxu0 0.0
    %1087 = vmatpush.xpose.msra.mxu0 0.0
    %1088 = vmatpush.xpose.msra.mxu0 0.0
    %1089 = vmatpush.xpose.msra.mxu0 0.0
    %1090 = vmatpush.xpose.msra.mxu0 0.0
    %1091 = vmatpush.xpose.msra.mxu0 0.0
    %1092 = vmatpush.xpose.msra.mxu0 0.0
    %1093 = vmatpush.xpose.msra.mxu0 0.0
    %1094 = vmatpush.xpose.msra.mxu0 0.0
    %1095 = vmatpush.xpose.msra.mxu0 0.0
    %1096 = vmatpush.xpose.msra.mxu0 0.0
    %1097 = vmatpush.xpose.msra.mxu0 0.0
    %1098 = vmatpush.xpose.msra.mxu0 0.0
    %1099 = vmatpush.xpose.msra.mxu0 %v1083
    %1100 = vmatpush.xpose.msra.mxu0 %v1081
    %1101 = vmatmul.f32.gmra.mxu0 %v1077
    %v1102 = vpop.f32.mrf.mxu0
    %v1103 = vadd.f32 0.0, %v1102
    %1104 = vmatmul.f32.gmra.mxu0 %v1079
    %v1105 = vpop.f32.mrf.mxu0
    %v1106 = vadd.f32 0.0, %v1105
    %1107 = vdwg.mxu0
    %v1108 = vmul.f32 %v1103, 0.25
    %v1109 = vmul.f32 %v1106, 0.25
    %v1110 = vadd.f32 %v1108, %v465
    %v1111 = vadd.f32 %v1109, %v466
    %v1112 = vsel %vm507, %v1110, -inf
    %1113 = vmax.xlane.f32.xlu0 %v1112
    %v1114 = vpop.xlane.xlu0 %1113
    %v1115 = vsel %vm511, %v1111, -inf
    %1116 = vmax.xlane.f32.xlu0 %v1115
    %v1117 = vpop.xlane.xlu0 %1116
    %v1118 = vsub.f32 %v1110, %v1114
    %v1119 = vsub.f32 %v1111, %v1117
    %v1120 = vmul.f32 %v1118, 1.442695
    %v1121 = vpow.pop %v1120
    %v1122 = vmul.f32 %v1119, 1.442695
    %v1123 = vpow.pop %v1122
    %v1124 = vsel %vm507, %v1121, 0.0
    %1125 = vadd.xlane.f32.xlu0 %v1124
    %v1126 = vpop.xlane.xlu0 %1125
    %v1127 = vsel %vm511, %v1123, 0.0
    %1128 = vadd.xlane.f32.xlu0 %v1127
    %v1129 = vpop.xlane.xlu0 %1128
    %v1130 = vrcp.pop %v1126
    %v1131 = vrcp.pop %v1129
    %v1132 = vmul.f32 %v1121, %v1130
    %v1133 = vmul.f32 %v1123, %v1131
    %1134 = vrot.lane.b32.xlu0 %v460, 32
    %v1135 = vpop.permute.xlu0 %1134
    %1136 = vrot.lane.b32.xlu0 %v463, 32
    %v1137 = vpop.permute.xlu0 %1136
    %v1140 = vsel %vm507, %v1132, 0
    %v1143 = vsel %vm507, %v1133, 0
    %v1145 = vsel %vm338, %v1137, 0
    %1147 = vmatpush.msra.mxu0 0.0
    %1148 = vmatpush.msra.mxu0 0.0
    %1149 = vmatpush.msra.mxu0 0.0
    %1150 = vmatpush.msra.mxu0 0.0
    %1151 = vmatpush.msra.mxu0 0.0
    %1152 = vmatpush.msra.mxu0 0.0
    %1153 = vmatpush.msra.mxu0 0.0
    %1154 = vmatpush.msra.mxu0 0.0
    %1155 = vmatpush.msra.mxu0 0.0
    %1156 = vmatpush.msra.mxu0 0.0
    %1157 = vmatpush.msra.mxu0 0.0
    %1158 = vmatpush.msra.mxu0 0.0
    %1159 = vmatpush.msra.mxu0 0.0
    %1160 = vmatpush.msra.mxu0 0.0
    %1161 = vmatpush.msra.mxu0 %v1145
    %1162 = vmatpush.msra.mxu0 %v1135
    %1163 = vmatmul.f32.gmra.mxu0 %v1140
    %v1164 = vpop.f32.mrf.mxu0
    %v1165 = vadd.f32 0.0, %v1164
    %1166 = vmatmul.f32.gmra.mxu0 %v1143
    %v1167 = vpop.f32.mrf.mxu0
    %v1168 = vadd.f32 0.0, %v1167
    %1169 = vdwg.mxu0
    %1170 = vrot.lane.b32.xlu0 %v414, 16
    %v1171 = vpop.permute.xlu0 %1170
    %1172 = vrot.lane.b32.xlu0 %v417, 16
    %v1173 = vpop.permute.xlu0 %1172
    %1174 = vrot.lane.b32.xlu0 %v437, 16
    %v1175 = vpop.permute.xlu0 %1174
    %1176 = vrot.lane.b32.xlu0 %v440, 16
    %v1177 = vpop.permute.xlu0 %1176
    %v1178 = vsel %vm467, %v1171, 0
    %v1180 = vsel %vm467, %v1173, 0
    %v1182 = vsel %vm467, %v1175, 0
    %v1184 = vsel %vm467, %v1177, 0
    %1186 = vmatpush.xpose.msra.mxu0 0.0
    %1187 = vmatpush.xpose.msra.mxu0 0.0
    %1188 = vmatpush.xpose.msra.mxu0 0.0
    %1189 = vmatpush.xpose.msra.mxu0 0.0
    %1190 = vmatpush.xpose.msra.mxu0 0.0
    %1191 = vmatpush.xpose.msra.mxu0 0.0
    %1192 = vmatpush.xpose.msra.mxu0 0.0
    %1193 = vmatpush.xpose.msra.mxu0 0.0
    %1194 = vmatpush.xpose.msra.mxu0 0.0
    %1195 = vmatpush.xpose.msra.mxu0 0.0
    %1196 = vmatpush.xpose.msra.mxu0 0.0
    %1197 = vmatpush.xpose.msra.mxu0 0.0
    %1198 = vmatpush.xpose.msra.mxu0 0.0
    %1199 = vmatpush.xpose.msra.mxu0 0.0
    %1200 = vmatpush.xpose.msra.mxu0 %v1184
    %1201 = vmatpush.xpose.msra.mxu0 %v1182
    %1202 = vmatmul.f32.gmra.mxu0 %v1178
    %v1203 = vpop.f32.mrf.mxu0
    %v1204 = vadd.f32 0.0, %v1203
    %1205 = vmatmul.f32.gmra.mxu0 %v1180
    %v1206 = vpop.f32.mrf.mxu0
    %v1207 = vadd.f32 0.0, %v1206
    %1208 = vdwg.mxu0
    %v1209 = vmul.f32 %v1204, 0.25
    %v1210 = vmul.f32 %v1207, 0.25
    %v1211 = vadd.f32 %v1209, %v465
    %v1212 = vadd.f32 %v1210, %v466
    %v1213 = vsel %vm507, %v1211, -inf
    %1214 = vmax.xlane.f32.xlu0 %v1213
    %v1215 = vpop.xlane.xlu0 %1214
    %v1216 = vsel %vm511, %v1212, -inf
    %1217 = vmax.xlane.f32.xlu0 %v1216
    %v1218 = vpop.xlane.xlu0 %1217
    %v1219 = vsub.f32 %v1211, %v1215
    %v1220 = vsub.f32 %v1212, %v1218
    %v1221 = vmul.f32 %v1219, 1.442695
    %v1222 = vpow.pop %v1221
    %v1223 = vmul.f32 %v1220, 1.442695
    %v1224 = vpow.pop %v1223
    %v1225 = vsel %vm507, %v1222, 0.0
    %1226 = vadd.xlane.f32.xlu0 %v1225
    %v1227 = vpop.xlane.xlu0 %1226
    %v1228 = vsel %vm511, %v1224, 0.0
    %1229 = vadd.xlane.f32.xlu0 %v1228
    %v1230 = vpop.xlane.xlu0 %1229
    %v1231 = vrcp.pop %v1227
    %v1232 = vrcp.pop %v1230
    %v1233 = vmul.f32 %v1222, %v1231
    %v1234 = vmul.f32 %v1224, %v1232
    %1235 = vrot.lane.b32.xlu0 %v460, 16
    %v1236 = vpop.permute.xlu0 %1235
    %1237 = vrot.lane.b32.xlu0 %v463, 16
    %v1238 = vpop.permute.xlu0 %1237
    %v1241 = vsel %vm507, %v1233, 0
    %v1244 = vsel %vm507, %v1234, 0
    %v1246 = vsel %vm338, %v1238, 0
    %1248 = vmatpush.msra.mxu0 0.0
    %1249 = vmatpush.msra.mxu0 0.0
    %1250 = vmatpush.msra.mxu0 0.0
    %1251 = vmatpush.msra.mxu0 0.0
    %1252 = vmatpush.msra.mxu0 0.0
    %1253 = vmatpush.msra.mxu0 0.0
    %1254 = vmatpush.msra.mxu0 0.0
    %1255 = vmatpush.msra.mxu0 0.0
    %1256 = vmatpush.msra.mxu0 0.0
    %1257 = vmatpush.msra.mxu0 0.0
    %1258 = vmatpush.msra.mxu0 0.0
    %1259 = vmatpush.msra.mxu0 0.0
    %1260 = vmatpush.msra.mxu0 0.0
    %1261 = vmatpush.msra.mxu0 0.0
    %1262 = vmatpush.msra.mxu0 %v1246
    %1263 = vmatpush.msra.mxu0 %v1236
    %1264 = vmatmul.f32.gmra.mxu0 %v1241
    %v1265 = vpop.f32.mrf.mxu0
    %v1266 = vadd.f32 0.0, %v1265
    %1267 = vmatmul.f32.gmra.mxu0 %v1244
    %v1268 = vpop.f32.mrf.mxu0
    %v1269 = vadd.f32 0.0, %v1268
    %1270 = vdwg.mxu0
    %1273 = vrot.lane.b32.xlu0 %v660, 16
    %v1274 = vpop.permute.xlu0 %1273
    %1275 = vrot.lane.b32.xlu0 %v663, 16
    %v1276 = vpop.permute.xlu0 %1275
    %1281 = vrot.lane.b32.xlu0 %v761, 32
    %v1282 = vpop.permute.xlu0 %1281
    %1283 = vrot.lane.b32.xlu0 %v764, 32
    %v1284 = vpop.permute.xlu0 %1283
    %1289 = vrot.lane.b32.xlu0 %v862, 48
    %v1290 = vpop.permute.xlu0 %1289
    %1291 = vrot.lane.b32.xlu0 %v865, 48
    %v1292 = vpop.permute.xlu0 %1291
    %1297 = vrot.lane.b32.xlu0 %v963, 64
    %v1298 = vpop.permute.xlu0 %1297
    %1299 = vrot.lane.b32.xlu0 %v966, 64
    %v1300 = vpop.permute.xlu0 %1299
    %1305 = vrot.lane.b32.xlu0 %v1064, 80
    %v1306 = vpop.permute.xlu0 %1305
    %1307 = vrot.lane.b32.xlu0 %v1067, 80
    %v1308 = vpop.permute.xlu0 %1307
    %1313 = vrot.lane.b32.xlu0 %v1165, 96
    %v1314 = vpop.permute.xlu0 %1313
    %1315 = vrot.lane.b32.xlu0 %v1168, 96
    %v1316 = vpop.permute.xlu0 %1315
    %1321 = vrot.lane.b32.xlu0 %v1266, 112
    %v1322 = vpop.permute.xlu0 %1321
    %1323 = vrot.lane.b32.xlu0 %v1269, 112
    %v1324 = vpop.permute.xlu0 %1323
    %v1327 = vsel %vm467, %v558, %v1274
    %v1328 = vsel %vm467, %v561, %v1276
    %v1329 = vsel %vm309, %v1327, %v1282
    %v1330 = vsel %vm309, %v1328, %v1284
    %v1331 = vsel %vm275, %v1329, %v1290
    %v1332 = vsel %vm275, %v1330, %v1292
    %v1333 = vsel %vm238, %v1331, %v1298
    %v1334 = vsel %vm238, %v1332, %v1300
    %vm1335 = vcmask 654336
    %v1336 = vsel %vm1335, %v1333, %v1306
    %v1337 = vsel %vm1335, %v1334, %v1308
    %vm1338 = vcmask 785408
    %v1339 = vsel %vm1338, %v1336, %v1314
    %v1340 = vsel %vm1338, %v1337, %v1316
    %vm1341 = vcmask 916480
    %v1342 = vsel %vm1341, %v1339, %v1322
    %v1343 = vsel %vm1341, %v1340, %v1324
    %v1344 = vld [vmem:[#allocation16] sm:$0xff]
    %v1345 = vld [vmem:[#allocation16 + $0x8] sm:$0xff]
    %v1346 = vld [vmem:[#allocation16 + $0x10] sm:$0xff]
    %v1347 = vld [vmem:[#allocation16 + $0x18] sm:$0xff]
    %v1348 = vld [vmem:[#allocation16 + $0x20] sm:$0xff]
    %v1349 = vld [vmem:[#allocation16 + $0x28] sm:$0xff]
    %v1350 = vld [vmem:[#allocation16 + $0x30] sm:$0xff]
    %v1351 = vld [vmem:[#allocation16 + $0x38] sm:$0xff]
    %v1352 = vld [vmem:[#allocation16 + $0x40] sm:$0xff]
    %v1353 = vld [vmem:[#allocation16 + $0x48] sm:$0xff]
    %v1354 = vld [vmem:[#allocation16 + $0x50] sm:$0xff]
    %v1355 = vld [vmem:[#allocation16 + $0x58] sm:$0xff]
    %v1356 = vld [vmem:[#allocation16 + $0x60] sm:$0xff]
    %v1357 = vld [vmem:[#allocation16 + $0x68] sm:$0xff]
    %v1358 = vld [vmem:[#allocation16 + $0x70] sm:$0xff]
    %v1359 = vld [vmem:[#allocation16 + $0x78] sm:$0xff]
    %v1360 = vld [vmem:[%s13] sm:$0x1]
    %v1362 = vperm.slane %v1360, 0
    %1364 = vmatpush.msra.mxu0 %v1359
    %1365 = vmatpush.msra.mxu0 %v1358
    %1366 = vmatpush.msra.mxu0 %v1357
    %1367 = vmatpush.msra.mxu0 %v1356
    %1368 = vmatpush.msra.mxu0 %v1355
    %1369 = vmatpush.msra.mxu0 %v1354
    %1370 = vmatpush.msra.mxu0 %v1353
    %1371 = vmatpush.msra.mxu0 %v1352
    %1372 = vmatpush.msra.mxu0 %v1351
    %1373 = vmatpush.msra.mxu0 %v1350
    %1374 = vmatpush.msra.mxu0 %v1349
    %1375 = vmatpush.msra.mxu0 %v1348
    %1376 = vmatpush.msra.mxu0 %v1347
    %1377 = vmatpush.msra.mxu0 %v1346
    %1378 = vmatpush.msra.mxu0 %v1345
    %1379 = vmatpush.msra.mxu0 %v1344
    %1380 = vmatmul.f32.gmra.mxu0 %v1342
    %v1381 = vpop.f32.mrf.mxu0
    %v1382 = vadd.f32 %v1362, %v1381
    %1383 = vmatmul.f32.gmra.mxu0 %v1343
    %v1384 = vpop.f32.mrf.mxu0
    %v1385 = vadd.f32 %v1362, %v1384
    %1386 = vdwg.mxu0
    %v1388 = vrot.slane %v1382, 4
    %v1390 = vadd.f32 %v1382, %v1388
    %v1391 = vadd.f32 %v1390, %v1385
    %v1392 = vmul.f32 %v1391, 0.33333334
    %v1393 = vld [vmem:[#allocation17] sm:$0xff]
    %v1394 = vld [vmem:[#allocation17 + $0x8] sm:$0xff]
    %v1395 = vld [vmem:[#allocation17 + $0x10] sm:$0xff]
    %v1396 = vld [vmem:[#allocation17 + $0x18] sm:$0xff]
    %v1397 = vld [vmem:[#allocation17 + $0x20] sm:$0xff]
    %v1398 = vld [vmem:[#allocation17 + $0x28] sm:$0xff]
    %v1399 = vld [vmem:[#allocation17 + $0x30] sm:$0xff]
    %v1400 = vld [vmem:[#allocation17 + $0x38] sm:$0xff]
    %v1401 = vld [vmem:[#allocation17 + $0x40] sm:$0xff]
    %v1402 = vld [vmem:[#allocation17 + $0x48] sm:$0xff]
    %v1403 = vld [vmem:[#allocation17 + $0x50] sm:$0xff]
    %v1404 = vld [vmem:[#allocation17 + $0x58] sm:$0xff]
    %v1405 = vld [vmem:[#allocation17 + $0x60] sm:$0xff]
    %v1406 = vld [vmem:[#allocation17 + $0x68] sm:$0xff]
    %v1407 = vld [vmem:[#allocation17 + $0x70] sm:$0xff]
    %v1408 = vld [vmem:[#allocation17 + $0x78] sm:$0xff]
    %v1409 = vld [vmem:[%s15] sm:$0x1]
    %v1411 = vperm.slane %v1409, 0
    %1413 = vmatpush.msra.mxu0 %v1408
    %1414 = vmatpush.msra.mxu0 %v1407
    %1415 = vmatpush.msra.mxu0 %v1406
    %1416 = vmatpush.msra.mxu0 %v1405
    %1417 = vmatpush.msra.mxu0 %v1404
    %1418 = vmatpush.msra.mxu0 %v1403
    %1419 = vmatpush.msra.mxu0 %v1402
    %1420 = vmatpush.msra.mxu0 %v1401
    %1421 = vmatpush.msra.mxu0 %v1400
    %1422 = vmatpush.msra.mxu0 %v1399
    %1423 = vmatpush.msra.mxu0 %v1398
    %1424 = vmatpush.msra.mxu0 %v1397
    %1425 = vmatpush.msra.mxu0 %v1396
    %1426 = vmatpush.msra.mxu0 %v1395
    %1427 = vmatpush.msra.mxu0 %v1394
    %1428 = vmatpush.msra.mxu0 %v1393
    %1429 = vmatmul.f32.gmra.mxu0 %v1392
    %v1430 = vpop.f32.mrf.mxu0
    %v1431 = vadd.f32 %v1411, %v1430
    %1432 = vdwg.mxu0
    %v1433 = vmax.f32 %v1431, 0.0
    %v1434 = vld [vmem:[#allocation19] sm:$0xff]
    %v1435 = vld [vmem:[#allocation19 + $0x8] sm:$0xff]
    %v1436 = vld [vmem:[#allocation19 + $0x10] sm:$0xff]
    %v1437 = vld [vmem:[#allocation19 + $0x18] sm:$0xff]
    %v1438 = vld [vmem:[#allocation19 + $0x20] sm:$0xff]
    %v1439 = vld [vmem:[#allocation19 + $0x28] sm:$0xff]
    %v1440 = vld [vmem:[#allocation19 + $0x30] sm:$0xff]
    %v1441 = vld [vmem:[#allocation19 + $0x38] sm:$0xff]
    %v1442 = vld [vmem:[#allocation19 + $0x40] sm:$0xff]
    %v1443 = vld [vmem:[#allocation19 + $0x48] sm:$0xff]
    %v1444 = vld [vmem:[#allocation19 + $0x50] sm:$0xff]
    %v1445 = vld [vmem:[#allocation19 + $0x58] sm:$0xff]
    %v1446 = vld [vmem:[#allocation19 + $0x60] sm:$0xff]
    %v1447 = vld [vmem:[#allocation19 + $0x68] sm:$0xff]
    %v1448 = vld [vmem:[#allocation19 + $0x70] sm:$0xff]
    %v1449 = vld [vmem:[#allocation19 + $0x78] sm:$0xff]
    %v1450 = vld [vmem:[%s17] sm:$0x1]
    %v1452 = vperm.slane %v1450, 0
    %1454 = vmatpush.msra.mxu0 %v1449
    %1455 = vmatpush.msra.mxu0 %v1448
    %1456 = vmatpush.msra.mxu0 %v1447
    %1457 = vmatpush.msra.mxu0 %v1446
    %1458 = vmatpush.msra.mxu0 %v1445
    %1459 = vmatpush.msra.mxu0 %v1444
    %1460 = vmatpush.msra.mxu0 %v1443
    %1461 = vmatpush.msra.mxu0 %v1442
    %1462 = vmatpush.msra.mxu0 %v1441
    %1463 = vmatpush.msra.mxu0 %v1440
    %1464 = vmatpush.msra.mxu0 %v1439
    %1465 = vmatpush.msra.mxu0 %v1438
    %1466 = vmatpush.msra.mxu0 %v1437
    %1467 = vmatpush.msra.mxu0 %v1436
    %1468 = vmatpush.msra.mxu0 %v1435
    %1469 = vmatpush.msra.mxu0 %v1434
    %1470 = vmatmul.f32.gmra.mxu0 %v1433
    %v1471 = vpop.f32.mrf.mxu0
    %v1472 = vadd.f32 %v1452, %v1471
    %1473 = vdwg.mxu0
    %1474 = vst [vmem:[#allocation20] sm:$0xf] %v1472
    // Predicated region
    $region118: #{tpu_custom_call.1} parent=1 // pred_check
      _
    $region119: #{tpu_custom_call.1} parent=1 // pred_check_branch
      %1476 = sbr.rel (0) target = $region121
    $region120: #{tpu_custom_call.1} parent=1 // pred_region
      %1478 = vsyncadd [#allocation4], 0
      %s1480 = sshll.u32 [#allocation20], 4
      %s1481 = int_to_ptr.vmem [resolvable:$true] %s1480
      %s1482 = sshll.u32 %s18, 4
      %s1483 = int_to_ptr.hbm [resolvable:$true] %s1482
      %1485 = dma.vmem_to_hbm [thread:$0]  %s1481, 64, %s1483, [#allocation4]
    $region121: #{tpu_custom_call.1} parent=1 // pred_fallthru
      _
    // Predicated region
    $region122: #{tpu_custom_call.1} parent=1 // pred_check
      _
    $region123: #{tpu_custom_call.1} parent=1 // pred_check_branch
      %1487 = sbr.rel (0) target = $region125
    $region124: #{tpu_custom_call.1} parent=1 // pred_region
      %1489 = dma.done [#allocation4], 64
    $region125: #{tpu_custom_call.1} parent=1 // pred_fallthru
      _
    %1490 = vsyncpa [#allocation3], 1
    %1491 = vsyncpa [#allocation6], 1
    %1492 = vsyncpa [#allocation9], 1
    %1493 = vsyncpa [#allocation12], 1
    %1494 = vsyncpa [#allocation15], 1
    %1495 = vsyncpa [#allocation18], 1
    %1496 = vsyncpa [#allocation4], 1

</llo_original>
